<compile_context>
chip_gen: v6e
topology: v6e:2x2x1
jax: 0.10.0
libtpu: 0.0.40
codegen_flags: <defaults>
</compile_context>

<pallas_src>
import functools

import jax
import jax.numpy as jnp
from jax.experimental import pallas as pl
from jax.experimental.pallas import tpu as pltpu


def _round_up(x, m):
    return (x + m - 1) // m * m


def _cdiv(a, b):
    return (a + b - 1) // b


def _vmem_cap_bytes():
    """~75% of physical VMEM (≈48 MiB on v7x, ≈96 MiB on v5e/v6e)."""
    phys = 64 << 20  # conservative default (v7x-sized) if the query fails
    try:
        phys = int(getattr(pltpu.get_tpu_info(), "vmem_capacity_bytes", phys))
    except Exception:
        pass
    return max(32 << 20, (phys * 3) // 4)


def _zero_map(nd):
    return lambda n, i: (0,) * nd


# ----------------------------------------------------------------------------
# Pallas kernel: fused attention gate over a (channels, tm) tile of tokens.
# ----------------------------------------------------------------------------
def _attention_gate_kernel(g_ref, x_ref, wg_ref, wx_ref, bgx_ref,
                           wpsi_ref, bpsi_ref, o_ref, *, tc, bpsi_is_smem):
    # g_ref : (1, F_g, tm)   x_ref : (1, F_l, tm)
    # wg_ref: (F_int, F_g)   wx_ref: (F_int, F_l)   bgx_ref: (F_int, 1)
    # wpsi_ref: (F_int, 1)   bpsi_ref: (1,) SMEM or (1, 1) VMEM
    # o_ref : (1, F_l, tm)
    tm = o_ref.shape[-1]
    bgx = bgx_ref[...]                               # (F_int, 1) f32
    wpsi = wpsi_ref[...]                             # (F_int, 1) f32
    bpsi = bpsi_ref[0] if bpsi_is_smem else bpsi_ref[...]

    # Token-dim chunking bounds the live (F_int, tc) f32 intermediate to a few
    # tens of vregs (avoids spill stores competing with the output store —
    # matters most on v5e's single vector-store slot).  For small F_int*tm,
    # tc == tm and this is a single pass identical to the unchunked kernel.
    for c0 in range(0, tm, tc):                      # static, tc divides tm
        sl = slice(c0, c0 + tc)
        g = g_ref[0, :, sl]                          # (F_g, tc), input dtype
        x = x_ref[0, :, sl]                          # (F_l, tc), input dtype

        # W_g(g) + W_x(x) + (b_g + b_x)  (1x1 convs + folded BN), f32 accum.
        h = jnp.dot(wg_ref[...], g, preferred_element_type=jnp.float32)
        h = h + jnp.dot(wx_ref[...], x, preferred_element_type=jnp.float32)
        h = jnp.maximum(h + bgx, 0.0)                # ReLU, (F_int, tc) f32

        # psi: 1-channel projection -> VPU multiply + sublane reduction (XLU),
        # keeping the MXU free and avoiding a 1-column matmul.
        s = jnp.sum(h * wpsi, axis=0, keepdims=True) + bpsi
        s = jax.nn.sigmoid(s)                        # (1, tc) f32

        # Gate the skip connection.  Ragged edge lanes (past HW) hold garbage
        # but the out-of-bounds portion of the store is masked by Pallas.
        o_ref[0, :, sl] = (x.astype(jnp.float32) * s).astype(o_ref.dtype)


def attention_gate(g3, x3, wg, wx, bgx, wpsi, bpsi, *, tm, tc, opt_specs):
    """g3: (N, F_g, HW), x3: (N, F_l, HW) -> (N, F_l, HW). Ragged edge tiles OK."""
    N, F_g, HW = g3.shape
    _, F_l, _ = x3.shape
    F_int = wg.shape[0]
    grid = (N, _cdiv(HW, tm))
    itemsize = jnp.dtype(x3.dtype).itemsize

    # VMEM budget: double-buffered activation tiles + constants + f32 scratch,
    # capped generation-aware (~75% of physical VMEM).
    tile_bytes = 2 * tm * (F_g + 2 * F_l) * itemsize
    w_bytes = 2 * 4 * (F_int * (F_g + F_l + 2) + 8)
    scratch_bytes = 4 * tc * (F_int + 16)
    vmem_limit = int(min(max(2 * (tile_bytes + w_bytes + scratch_bytes) + (8 << 20),
                             32 << 20), _vmem_cap_bytes()))

    m_total = N * HW
    cost = pl.CostEstimate(
        flops=int(2 * m_total * F_int * (F_g + F_l) + 6 * m_total * F_int),
        transcendentals=int(m_total),
        bytes_accessed=int(m_total * (F_g + 2 * F_l) * itemsize + w_bytes),
    )

    if opt_specs:
        # Constant operands: index map is always (0, 0) so they are never
        # re-fetched -> single buffer saves VMEM (biggest win on v7x's 64 MiB).
        const_spec = lambda shape: pl.BlockSpec(shape, _zero_map(len(shape)),
                                                pipeline_mode=pl.Buffered(1))
        bpsi_spec = pl.BlockSpec(memory_space=pltpu.MemorySpace.SMEM)  # scalar
    else:
        const_spec = lambda shape: pl.BlockSpec(shape, _zero_map(len(shape)))
        bpsi_spec = pl.BlockSpec((1, 1), lambda n, i: (0, 0))

    kernel = functools.partial(_attention_gate_kernel, tc=tc,
                               bpsi_is_smem=opt_specs)

    return pl.pallas_call(
        kernel,
        out_shape=jax.ShapeDtypeStruct((N, F_l, HW), x3.dtype),
        grid_spec=pltpu.PrefetchScalarGridSpec(
            num_scalar_prefetch=0,
            grid=grid,
            in_specs=[
                pl.BlockSpec((1, F_g, tm), lambda n, i: (n, 0, i)),   # g tile
                pl.BlockSpec((1, F_l, tm), lambda n, i: (n, 0, i)),   # x tile
                const_spec((F_int, F_g)),                             # W_g (folded)
                const_spec((F_int, F_l)),                             # W_x (folded)
                const_spec((F_int, 1)),                               # b_g+b_x
                const_spec((F_int, 1)),                               # W_psi
                bpsi_spec,                                            # b_psi
            ],
            out_specs=pl.BlockSpec((1, F_l, tm), lambda n, i: (n, 0, i)),
        ),
        compiler_params=pltpu.CompilerParams(
            dimension_semantics=("parallel", "parallel"),
            vmem_limit_bytes=vmem_limit),
        cost_estimate=cost,
    )(g3, x3, wg, wx, bgx, wpsi, bpsi)


# ----------------------------------------------------------------------------
# Parameter construction + BN folding (plain-JAX glue).
# ----------------------------------------------------------------------------
def _fold_conv_bn(w, b, gamma, beta, mean, var, eps=1e-5):
    """Fold eval-mode BatchNorm into a 1x1 conv with weight w:(Cout, Cin)."""
    scale = gamma / jnp.sqrt(var + eps)              # (Cout,)
    return w * scale[:, None], (b - mean) * scale + beta


def make_raw_params(key, F_g, F_l, F_int, dtype=jnp.float32):
    """Raw conv weights/biases + BN affine params and (non-trivial) running stats."""
    ks = jax.random.split(key, 15)
    wg = jax.random.normal(ks[0], (F_int, F_g), dtype) * 0.2
    bg = jax.random.normal(ks[1], (F_int,), dtype) * 0.1
    wx = jax.random.normal(ks[2], (F_int, F_l), dtype) * 0.2
    bx = jax.random.normal(ks[3], (F_int,), dtype) * 0.1
    wp = jax.random.normal(ks[4], (1, F_int), dtype) * 0.2
    bp = jax.random.normal(ks[5], (1,), dtype) * 0.1
    uni = lambda k, n, lo, hi: jax.random.uniform(k, (n,), dtype, lo, hi)
    bn_g = (uni(ks[6], F_int, 0.5, 1.5), uni(ks[7], F_int, -0.2, 0.2),
            uni(ks[8], F_int, -0.5, 0.5), uni(ks[9], F_int, 0.5, 2.0))
    bn_x = (uni(ks[10], F_int, 0.5, 1.5), uni(ks[11], F_int, -0.2, 0.2),
            uni(ks[12], F_int, -0.5, 0.5), uni(ks[13], F_int, 0.5, 2.0))
    bn_p = (uni(ks[14], 1, 0.5, 1.5), jnp.zeros((1,), dtype),
            jnp.full((1,), 0.1, dtype), jnp.full((1,), 1.3, dtype))
    return dict(wg=wg, bg=bg, wx=wx, bx=bx, wpsi=wp, bpsi=bp,
                bn_g=bn_g, bn_x=bn_x, bn_psi=bn_p)


def fold_params(raw, eps=1e-5):
    """Eval-mode BN folded into the 1x1 convs -> kernel-ready params."""
    wg_f, bg_f = _fold_conv_bn(raw["wg"], raw["bg"], *raw["bn_g"], eps=eps)
    wx_f, bx_f = _fold_conv_bn(raw["wx"], raw["bx"], *raw["bn_x"], eps=eps)
    wp_f, bp_f = _fold_conv_bn(raw["wpsi"], raw["bpsi"], *raw["bn_psi"], eps=eps)
    F_int = wg_f.shape[0]
    return dict(
        wg=wg_f,                                     # (F_int, F_g)
        wx=wx_f,                                     # (F_int, F_l)
        bgx=(bg_f + bx_f).reshape(F_int, 1),         # fused bias
        wpsi=wp_f.reshape(F_int, 1),                 # psi weight, column form
        bpsi=bp_f.reshape(1),                        # psi bias, scalar
    )


# ----------------------------------------------------------------------------
# Module-level wrapper: NCHW in, NCHW out (matches the PyTorch forward).
# ----------------------------------------------------------------------------
@functools.partial(jax.jit, static_argnames=("tm", "io_dtype", "opt_specs"))
def _attention_block_impl(g_nchw, x_nchw, params, *, tm, io_dtype, opt_specs):
    N, F_g, H, W = g_nchw.shape
    _, F_l, _, _ = x_nchw.shape
    F_int = params["wg"].shape[0]
    hw = H * W
    out_dtype = x_nchw.dtype
    cdt = out_dtype if io_dtype is None else jnp.dtype(io_dtype)
    itemsize = jnp.dtype(cdt).itemsize

    # ---- token tile: multiple of 128 lanes, NO padding of HW up to tm ----
    hw_128 = _round_up(hw, 128)
    tm_eff = min(max(128, (int(tm) // 128) * 128), hw_128)
    # v7x megacore: with a single batch row keep >= 2 token tiles in the grid
    if N == 1 and hw_128 >= 256:
        tm_eff = min(tm_eff, _round_up(_cdiv(hw_128, 2), 128))
    # keep double-buffered activation tiles within ~60% of the VMEM cap
    cap = _vmem_cap_bytes()
    while tm_eff > 128 and 2 * tm_eff * (F_g + 2 * F_l) * itemsize > int(cap * 0.6):
        tm_eff -= 128

    # ---- in-kernel token chunk bounding the live (F_int, tc) f32 block ----
    tc = tm_eff
    while tc % 256 == 0 and tc > 128 and F_int * tc * 4 > (160 << 10):
        tc //= 2

    # free reshapes (channels-major layout preserved, no transposes, no pad)
    g3 = g_nchw.reshape(N, F_g, hw).astype(cdt)
    x3 = x_nchw.reshape(N, F_l, hw).astype(cdt)

    bpsi = params["bpsi"].astype(jnp.float32)
    bpsi = bpsi.reshape(1) if opt_specs else bpsi.reshape(1, 1)

    out3 = attention_gate(
        g3, x3,
        params["wg"].astype(cdt), params["wx"].astype(cdt),
        params["bgx"].astype(jnp.float32).reshape(F_int, 1),
        params["wpsi"].astype(jnp.float32).reshape(F_int, 1),
        bpsi,
        tm=tm_eff, tc=tc, opt_specs=opt_specs)

    return out3.reshape(N, F_l, H, W).astype(out_dtype)


_OPT_SPECS_OK = True   # feature probe: Buffered(1) consts + SMEM scalar bias


def attention_block(g_nchw, x_nchw, params, *, tm=1024, io_dtype=jnp.bfloat16):
    """NCHW -> NCHW attention gate (eval-mode BN folded into the 1x1 convs).

    io_dtype is the HBM dtype of the g/x/out tiles inside the kernel (matmuls
    always accumulate in f32); bf16 roughly halves bandwidth on this
    memory-bound kernel.  Pass io_dtype=jnp.float32 (or None) for bit-accurate
    f32 I/O.  The returned dtype always matches x's dtype.
    """
    global _OPT_SPECS_OK
    if _OPT_SPECS_OK:
        try:
            return _attention_block_impl(g_nchw, x_nchw, params,
                                         tm=int(tm), io_dtype=io_dtype,
                                         opt_specs=True)
        except Exception:
            # Toolchain without pipeline_mode / SMEM-operand support: fall back
            # to plain double-buffered VMEM specs (functionally identical).
            _OPT_SPECS_OK = False
    return _attention_block_impl(g_nchw, x_nchw, params,
                                 tm=int(tm), io_dtype=io_dtype, opt_specs=False)


def _reference(g_nchw, x_nchw, raw, eps=1e-5):
    """Pure-JAX reference: UNFOLDED 1x1 conv -> eval-mode BN, per the module."""
    def conv_bn(w, b, bn, inp):
        y = jnp.einsum('oi,nihw->nohw', w, inp) + b.reshape(1, -1, 1, 1)
        gamma, beta, mean, var = bn
        inv = (gamma / jnp.sqrt(var + eps)).reshape(1, -1, 1, 1)
        return (y - mean.reshape(1, -1, 1, 1)) * inv + beta.reshape(1, -1, 1, 1)
    g1 = conv_bn(raw["wg"], raw["bg"], raw["bn_g"], g_nchw)
    x1 = conv_bn(raw["wx"], raw["bx"], raw["bn_x"], x_nchw)
    h = jnp.maximum(g1 + x1, 0.0)
    s = jax.nn.sigmoid(conv_bn(raw["wpsi"], raw["bpsi"], raw["bn_psi"], h))
    return x_nchw * s


if __name__ == "__main__":
    key = jax.random.PRNGKey(0)
    k_g, k_x, k_p = jax.random.split(key, 3)

    # small shapes consistent with the module: N=2, F_g=F_l=4, F_int=8, H=W=16
    N, F_g, F_l, F_int, H, W = 2, 4, 4, 8, 16, 16
    g = jax.random.normal(k_g, (N, F_g, H, W), jnp.float32)
    x = jax.random.normal(k_x, (N, F_l, H, W), jnp.float32)
    raw = make_raw_params(k_p, F_g, F_l, F_int)
    params = fold_params(raw)
    ref = _reference(g, x, raw)

    # 1) bit-accurate f32 I/O path — tight check (also validates BN folding
    #    against the unfolded conv+BN reference with non-trivial running stats)
    out_f32 = jax.block_until_ready(
        attention_block(g, x, params, io_dtype=jnp.float32))
    assert out_f32.shape == (N, F_l, H, W) and out_f32.dtype == jnp.float32
    assert jnp.allclose(out_f32, ref, atol=1e-4, rtol=1e-4), "f32 mismatch"

    # 2) default path: bf16 HBM tiles inside the kernel, f32 accumulation,
    #    output cast back to the caller's dtype (f32 here)
    out_def = jax.block_until_ready(attention_block(g, x, params))
    assert out_def.dtype == jnp.float32
    assert float(jnp.max(jnp.abs(out_def - ref))) < 1.5e-1, "bf16 path mismatch"

    # 3) ragged token tiles: HW=400 with tm=128 -> last tile masked, no padding
    H2 = W2 = 20
    g2 = jax.random.normal(jax.random.PRNGKey(1), (N, F_g, H2, W2), jnp.float32)
    x2 = jax.random.normal(jax.random.PRNGKey(2), (N, F_l, H2, W2), jnp.float32)
    out2 = jax.block_until_ready(
        attention_block(g2, x2, params, tm=128, io_dtype=jnp.float32))
    assert jnp.allclose(out2, _reference(g2, x2, raw), atol=1e-4, rtol=1e-4), \
        "ragged-tile mismatch"

    # 4) native bf16 inputs stay bf16 on output
    out_bf = jax.block_until_ready(
        attention_block(g.astype(jnp.bfloat16), x.astype(jnp.bfloat16), params))
    assert out_bf.dtype == jnp.bfloat16
    assert float(jnp.max(jnp.abs(out_bf.astype(jnp.float32) - ref))) < 1.5e-1

    print("KERNEL_OK")
</pallas_src>

<mosaic_0001>
module attributes {stable_mosaic.version = 11 : i64} {
  func.func @_attention_gate_kernel(%arg0: i32, %arg1: i32, %arg2: memref<1x4x256xf32, #tpu.memory_space<vmem>>, %arg3: memref<1x4x256xf32, #tpu.memory_space<vmem>>, %arg4: memref<8x4xf32, #tpu.memory_space<vmem>>, %arg5: memref<8x4xf32, #tpu.memory_space<vmem>>, %arg6: memref<8x1xf32, #tpu.memory_space<vmem>>, %arg7: memref<8x1xf32, #tpu.memory_space<vmem>>, %arg8: memref<1xf32, #tpu.memory_space<smem>>, %arg9: memref<1x4x256xf32, #tpu.memory_space<vmem>>) attributes {dimension_semantics = [#tpu.dimension_semantics<parallel>, #tpu.dimension_semantics<parallel>], iteration_bounds = array<i64: 2, 1>, scalar_prefetch = 0 : i64, scratch_operands = 0 : i64, tpu.core_type = #tpu.core_type<tc>, window_params = [{transform_indices = @transform_0, window_bounds = array<i64: 1, 4, 256>}, {transform_indices = @transform_1, window_bounds = array<i64: 1, 4, 256>}, {pipeline_mode = #tpu.pipeline_mode<synchronous>, transform_indices = @transform_2, window_bounds = array<i64: 8, 4>}, {pipeline_mode = #tpu.pipeline_mode<synchronous>, transform_indices = @transform_3, window_bounds = array<i64: 8, 4>}, {pipeline_mode = #tpu.pipeline_mode<synchronous>, transform_indices = @transform_4, window_bounds = array<i64: 8, 1>}, {pipeline_mode = #tpu.pipeline_mode<synchronous>, transform_indices = @transform_5, window_bounds = array<i64: 8, 1>}, {transform_indices = @transform_6, window_bounds = array<i64: 1>}, {transform_indices = @transform_7, window_bounds = array<i64: 1, 4, 256>}]} {
    %c0 = arith.constant 0 : index
    %c0_0 = arith.constant 0 : index
    %0 = vector.load %arg6[%c0, %c0_0] : memref<8x1xf32, #tpu.memory_space<vmem>>, vector<8x1xf32>
    %c0_1 = arith.constant 0 : index
    %c0_2 = arith.constant 0 : index
    %1 = vector.load %arg7[%c0_1, %c0_2] : memref<8x1xf32, #tpu.memory_space<vmem>>, vector<8x1xf32>
    %c0_3 = arith.constant 0 : index
    %2 = memref.load %arg8[%c0_3] : memref<1xf32, #tpu.memory_space<smem>>
    %c0_4 = arith.constant 0 : index
    %c0_5 = arith.constant 0 : index
    %c0_6 = arith.constant 0 : index
    %3 = vector.load %arg2[%c0_4, %c0_5, %c0_6] : memref<1x4x256xf32, #tpu.memory_space<vmem>>, vector<1x4x256xf32>
    %4 = vector.shape_cast %3 : vector<1x4x256xf32> to vector<4x256xf32>
    %c0_7 = arith.constant 0 : index
    %c0_8 = arith.constant 0 : index
    %c0_9 = arith.constant 0 : index
    %5 = vector.load %arg3[%c0_7, %c0_8, %c0_9] : memref<1x4x256xf32, #tpu.memory_space<vmem>>, vector<1x4x256xf32>
    %6 = vector.shape_cast %5 : vector<1x4x256xf32> to vector<4x256xf32>
    %c0_10 = arith.constant 0 : index
    %c0_11 = arith.constant 0 : index
    %7 = vector.load %arg4[%c0_10, %c0_11] : memref<8x4xf32, #tpu.memory_space<vmem>>, vector<8x4xf32>
    %cst = arith.constant dense<0.000000e+00> : vector<8x256xf32>
    %8 = tpu.matmul %7, %4, %cst {dimension_numbers = #tpu.dot_dimension_numbers<[1], [0], [0], [1], [0, 0, 1, 1], [], []>} : vector<8x4xf32>, vector<4x256xf32>, vector<8x256xf32> -> vector<8x256xf32>
    %c0_12 = arith.constant 0 : index
    %c0_13 = arith.constant 0 : index
    %9 = vector.load %arg5[%c0_12, %c0_13] : memref<8x4xf32, #tpu.memory_space<vmem>>, vector<8x4xf32>
    %cst_14 = arith.constant dense<0.000000e+00> : vector<8x256xf32>
    %10 = tpu.matmul %9, %6, %cst_14 {dimension_numbers = #tpu.dot_dimension_numbers<[1], [0], [0], [1], [0, 0, 1, 1], [], []>} : vector<8x4xf32>, vector<4x256xf32>, vector<8x256xf32> -> vector<8x256xf32>
    %11 = arith.addf %8, %10 : vector<8x256xf32>
    %12 = vector.broadcast %0 : vector<8x1xf32> to vector<8x256xf32>
    %13 = arith.addf %11, %12 : vector<8x256xf32>
    %cst_15 = arith.constant 0.000000e+00 : f32
    %14 = vector.broadcast %cst_15 : f32 to vector<8x256xf32>
    %15 = arith.maximumf %13, %14 : vector<8x256xf32>
    %16 = vector.broadcast %1 : vector<8x1xf32> to vector<8x256xf32>
    %17 = arith.mulf %15, %16 : vector<8x256xf32>
    %cst_16 = arith.constant dense<0.000000e+00> : vector<256xf32>
    %18 = vector.multi_reduction <add>, %17, %cst_16 [0] : vector<8x256xf32> to vector<256xf32>
    %19 = vector.shape_cast %18 : vector<256xf32> to vector<1x256xf32>
    %20 = vector.broadcast %2 : f32 to vector<1x256xf32>
    %21 = arith.addf %19, %20 : vector<1x256xf32>
    %22 = arith.negf %21 : vector<1x256xf32>
    %23 = math.exp %22 : vector<1x256xf32>
    %cst_17 = arith.constant 1.000000e+00 : f32
    %24 = vector.broadcast %cst_17 : f32 to vector<1x256xf32>
    %25 = arith.addf %24, %23 : vector<1x256xf32>
    %26 = arith.divf %24, %25 : vector<1x256xf32>
    %27 = vector.broadcast %26 : vector<1x256xf32> to vector<4x256xf32>
    %28 = arith.mulf %6, %27 : vector<4x256xf32>
    %c0_18 = arith.constant 0 : index
    %c0_19 = arith.constant 0 : index
    %c0_20 = arith.constant 0 : index
    %29 = vector.load %arg9[%c0_18, %c0_19, %c0_20] : memref<1x4x256xf32, #tpu.memory_space<vmem>>, vector<1x4x256xf32>
    %30 = vector.shape_cast %29 : vector<1x4x256xf32> to vector<4x256xf32>
    %31 = vector.shape_cast %28 : vector<4x256xf32> to vector<1x4x256xf32>
    tpu.vector_store %arg9[%c0_18, %c0_19, %c0_20], %31 {strides = array<i32>} : memref<1x4x256xf32, #tpu.memory_space<vmem>>, vector<1x4x256xf32>,
    return
  }
  func.func @transform_0(%arg0: i32, %arg1: i32) -> (i32, i32, i32) {
    %c0_i32 = arith.constant 0 : i32
    %c0_i32_0 = arith.constant 0 : i32
    return %arg0, %c0_i32, %arg1 : i32, i32, i32
  }
  func.func @transform_1(%arg0: i32, %arg1: i32) -> (i32, i32, i32) {
    %c0_i32 = arith.constant 0 : i32
    %c0_i32_0 = arith.constant 0 : i32
    return %arg0, %c0_i32, %arg1 : i32, i32, i32
  }
  func.func @transform_2(%arg0: i32, %arg1: i32) -> (i32, i32) {
    %c0_i32 = arith.constant 0 : i32
    %c0_i32_0 = arith.constant 0 : i32
    %c0_i32_1 = arith.constant 0 : i32
    return %c0_i32, %c0_i32_0 : i32, i32
  }
  func.func @transform_3(%arg0: i32, %arg1: i32) -> (i32, i32) {
    %c0_i32 = arith.constant 0 : i32
    %c0_i32_0 = arith.constant 0 : i32
    %c0_i32_1 = arith.constant 0 : i32
    return %c0_i32, %c0_i32_0 : i32, i32
  }
  func.func @transform_4(%arg0: i32, %arg1: i32) -> (i32, i32) {
    %c0_i32 = arith.constant 0 : i32
    %c0_i32_0 = arith.constant 0 : i32
    %c0_i32_1 = arith.constant 0 : i32
    return %c0_i32, %c0_i32_0 : i32, i32
  }
  func.func @transform_5(%arg0: i32, %arg1: i32) -> (i32, i32) {
    %c0_i32 = arith.constant 0 : i32
    %c0_i32_0 = arith.constant 0 : i32
    %c0_i32_1 = arith.constant 0 : i32
    return %c0_i32, %c0_i32_0 : i32, i32
  }
  func.func @transform_6(%arg0: i32, %arg1: i32) -> i32 {
    %c0_i32 = arith.constant 0 : i32
    %c0_i32_0 = arith.constant 0 : i32
    return %c0_i32 : i32
  }
  func.func @transform_7(%arg0: i32, %arg1: i32) -> (i32, i32, i32) {
    %c0_i32 = arith.constant 0 : i32
    %c0_i32_0 = arith.constant 0 : i32
    return %arg0, %c0_i32, %arg1 : i32, i32, i32
  }
}

module attributes {stable_mosaic.version = 11 : i64} {
  func.func @_attention_gate_kernel(%arg0: i32, %arg1: i32, %arg2: memref<1x4x256xf32, #tpu.memory_space<vmem>>, %arg3: memref<1x4x256xf32, #tpu.memory_space<vmem>>, %arg4: memref<8x4xf32, #tpu.memory_space<vmem>>, %arg5: memref<8x4xf32, #tpu.memory_space<vmem>>, %arg6: memref<8x1xf32, #tpu.memory_space<vmem>>, %arg7: memref<8x1xf32, #tpu.memory_space<vmem>>, %arg8: memref<1x1xf32, #tpu.memory_space<vmem>>, %arg9: memref<1x4x256xf32, #tpu.memory_space<vmem>>) attributes {dimension_semantics = [#tpu.dimension_semantics<parallel>, #tpu.dimension_semantics<parallel>], iteration_bounds = array<i64: 2, 1>, scalar_prefetch = 0 : i64, scratch_operands = 0 : i64, tpu.core_type = #tpu.core_type<tc>, window_params = [{transform_indices = @transform_0, window_bounds = array<i64: 1, 4, 256>}, {transform_indices = @transform_1, window_bounds = array<i64: 1, 4, 256>}, {pipeline_mode = #tpu.pipeline_mode<synchronous>, transform_indices = @transform_2, window_bounds = array<i64: 8, 4>}, {pipeline_mode = #tpu.pipeline_mode<synchronous>, transform_indices = @transform_3, window_bounds = array<i64: 8, 4>}, {pipeline_mode = #tpu.pipeline_mode<synchronous>, transform_indices = @transform_4, window_bounds = array<i64: 8, 1>}, {pipeline_mode = #tpu.pipeline_mode<synchronous>, transform_indices = @transform_5, window_bounds = array<i64: 8, 1>}, {pipeline_mode = #tpu.pipeline_mode<synchronous>, transform_indices = @transform_6, window_bounds = array<i64: 1, 1>}, {transform_indices = @transform_7, window_bounds = array<i64: 1, 4, 256>}]} {
    %c0 = arith.constant 0 : index
    %c0_0 = arith.constant 0 : index
    %0 = vector.load %arg6[%c0, %c0_0] : memref<8x1xf32, #tpu.memory_space<vmem>>, vector<8x1xf32>
    %c0_1 = arith.constant 0 : index
    %c0_2 = arith.constant 0 : index
    %1 = vector.load %arg7[%c0_1, %c0_2] : memref<8x1xf32, #tpu.memory_space<vmem>>, vector<8x1xf32>
    %c0_3 = arith.constant 0 : index
    %c0_4 = arith.constant 0 : index
    %2 = vector.load %arg8[%c0_3, %c0_4] : memref<1x1xf32, #tpu.memory_space<vmem>>, vector<1x1xf32>
    %c0_5 = arith.constant 0 : index
    %c0_6 = arith.constant 0 : index
    %c0_7 = arith.constant 0 : index
    %3 = vector.load %arg2[%c0_5, %c0_6, %c0_7] : memref<1x4x256xf32, #tpu.memory_space<vmem>>, vector<1x4x256xf32>
    %4 = vector.shape_cast %3 : vector<1x4x256xf32> to vector<4x256xf32>
    %c0_8 = arith.constant 0 : index
    %c0_9 = arith.constant 0 : index
    %c0_10 = arith.constant 0 : index
    %5 = vector.load %arg3[%c0_8, %c0_9, %c0_10] : memref<1x4x256xf32, #tpu.memory_space<vmem>>, vector<1x4x256xf32>
    %6 = vector.shape_cast %5 : vector<1x4x256xf32> to vector<4x256xf32>
    %c0_11 = arith.constant 0 : index
    %c0_12 = arith.constant 0 : index
    %7 = vector.load %arg4[%c0_11, %c0_12] : memref<8x4xf32, #tpu.memory_space<vmem>>, vector<8x4xf32>
    %cst = arith.constant dense<0.000000e+00> : vector<8x256xf32>
    %8 = tpu.matmul %7, %4, %cst {dimension_numbers = #tpu.dot_dimension_numbers<[1], [0], [0], [1], [0, 0, 1, 1], [], []>} : vector<8x4xf32>, vector<4x256xf32>, vector<8x256xf32> -> vector<8x256xf32>
    %c0_13 = arith.constant 0 : index
    %c0_14 = arith.constant 0 : index
    %9 = vector.load %arg5[%c0_13, %c0_14] : memref<8x4xf32, #tpu.memory_space<vmem>>, vector<8x4xf32>
    %cst_15 = arith.constant dense<0.000000e+00> : vector<8x256xf32>
    %10 = tpu.matmul %9, %6, %cst_15 {dimension_numbers = #tpu.dot_dimension_numbers<[1], [0], [0], [1], [0, 0, 1, 1], [], []>} : vector<8x4xf32>, vector<4x256xf32>, vector<8x256xf32> -> vector<8x256xf32>
    %11 = arith.addf %8, %10 : vector<8x256xf32>
    %12 = vector.broadcast %0 : vector<8x1xf32> to vector<8x256xf32>
    %13 = arith.addf %11, %12 : vector<8x256xf32>
    %cst_16 = arith.constant 0.000000e+00 : f32
    %14 = vector.broadcast %cst_16 : f32 to vector<8x256xf32>
    %15 = arith.maximumf %13, %14 : vector<8x256xf32>
    %16 = vector.broadcast %1 : vector<8x1xf32> to vector<8x256xf32>
    %17 = arith.mulf %15, %16 : vector<8x256xf32>
    %cst_17 = arith.constant dense<0.000000e+00> : vector<256xf32>
    %18 = vector.multi_reduction <add>, %17, %cst_17 [0] : vector<8x256xf32> to vector<256xf32>
    %19 = vector.shape_cast %18 : vector<256xf32> to vector<1x256xf32>
    %20 = vector.broadcast %2 : vector<1x1xf32> to vector<1x256xf32>
    %21 = arith.addf %19, %20 : vector<1x256xf32>
    %22 = arith.negf %21 : vector<1x256xf32>
    %23 = math.exp %22 : vector<1x256xf32>
    %cst_18 = arith.constant 1.000000e+00 : f32
    %24 = vector.broadcast %cst_18 : f32 to vector<1x256xf32>
    %25 = arith.addf %24, %23 : vector<1x256xf32>
    %26 = arith.divf %24, %25 : vector<1x256xf32>
    %27 = vector.broadcast %26 : vector<1x256xf32> to vector<4x256xf32>
    %28 = arith.mulf %6, %27 : vector<4x256xf32>
    %c0_19 = arith.constant 0 : index
    %c0_20 = arith.constant 0 : index
    %c0_21 = arith.constant 0 : index
    %29 = vector.load %arg9[%c0_19, %c0_20, %c0_21] : memref<1x4x256xf32, #tpu.memory_space<vmem>>, vector<1x4x256xf32>
    %30 = vector.shape_cast %29 : vector<1x4x256xf32> to vector<4x256xf32>
    %31 = vector.shape_cast %28 : vector<4x256xf32> to vector<1x4x256xf32>
    tpu.vector_store %arg9[%c0_19, %c0_20, %c0_21], %31 {strides = array<i32>} : memref<1x4x256xf32, #tpu.memory_space<vmem>>, vector<1x4x256xf32>,
    return
  }
  func.func @transform_0(%arg0: i32, %arg1: i32) -> (i32, i32, i32) {
    %c0_i32 = arith.constant 0 : i32
    %c0_i32_0 = arith.constant 0 : i32
    return %arg0, %c0_i32, %arg1 : i32, i32, i32
  }
  func.func @transform_1(%arg0: i32, %arg1: i32) -> (i32, i32, i32) {
    %c0_i32 = arith.constant 0 : i32
    %c0_i32_0 = arith.constant 0 : i32
    return %arg0, %c0_i32, %arg1 : i32, i32, i32
  }
  func.func @transform_2(%arg0: i32, %arg1: i32) -> (i32, i32) {
    %c0_i32 = arith.constant 0 : i32
    %c0_i32_0 = arith.constant 0 : i32
    %c0_i32_1 = arith.constant 0 : i32
    return %c0_i32, %c0_i32_0 : i32, i32
  }
  func.func @transform_3(%arg0: i32, %arg1: i32) -> (i32, i32) {
    %c0_i32 = arith.constant 0 : i32
    %c0_i32_0 = arith.constant 0 : i32
    %c0_i32_1 = arith.constant 0 : i32
    return %c0_i32, %c0_i32_0 : i32, i32
  }
  func.func @transform_4(%arg0: i32, %arg1: i32) -> (i32, i32) {
    %c0_i32 = arith.constant 0 : i32
    %c0_i32_0 = arith.constant 0 : i32
    %c0_i32_1 = arith.constant 0 : i32
    return %c0_i32, %c0_i32_0 : i32, i32
  }
  func.func @transform_5(%arg0: i32, %arg1: i32) -> (i32, i32) {
    %c0_i32 = arith.constant 0 : i32
    %c0_i32_0 = arith.constant 0 : i32
    %c0_i32_1 = arith.constant 0 : i32
    return %c0_i32, %c0_i32_0 : i32, i32
  }
  func.func @transform_6(%arg0: i32, %arg1: i32) -> (i32, i32) {
    %c0_i32 = arith.constant 0 : i32
    %c0_i32_0 = arith.constant 0 : i32
    %c0_i32_1 = arith.constant 0 : i32
    return %c0_i32, %c0_i32_0 : i32, i32
  }
  func.func @transform_7(%arg0: i32, %arg1: i32) -> (i32, i32, i32) {
    %c0_i32 = arith.constant 0 : i32
    %c0_i32_0 = arith.constant 0 : i32
    return %arg0, %c0_i32, %arg1 : i32, i32, i32
  }
}

</mosaic_0001>

<llo_original>
// kernel: _attention_block_impl.1
$region0: #{_attention_block_impl.1}
  #allocation0 [shape = 'u32[]', space=smem, size = 0x4, offset = 0x4, fixed_abs, tag = 'smem constant byte address 0x4 - core index']
  #allocation1 [shape = 'u32[144,128]{1,0:T(1,128)}', space=vmem, size = 0x12000, scoped, tag = 'internal scratch']
  #allocation2 [shape = 'f32[1]{0:T(128)S(6)}', space=smem, size = 0x200, scoped, tag = 'scoped memory for _attention_block_impl.1']
  %s0 = inlined_call_operand.vmem [shape: f32[2,4,256], index: 0, kind: input, shape index: {}]
  %s1 = inlined_call_operand.vmem [shape: f32[2,4,256], index: 1, kind: input, shape index: {}]
  %s2 = inlined_call_operand.vmem [shape: f32[8,4], index: 2, kind: input, shape index: {}]
  %s3 = inlined_call_operand.vmem [shape: f32[8,4], index: 3, kind: input, shape index: {}]
  %s4 = inlined_call_operand.vmem [shape: f32[8,1], index: 4, kind: input, shape index: {}]
  %s5 = inlined_call_operand.vmem [shape: f32[8,1], index: 5, kind: input, shape index: {}]
  %s6 = inlined_call_operand.<no memory space> [shape: f32[1], index: 6, kind: input, shape index: {}]
  %s7 = inlined_call_operand.vmem [shape: f32[2,4,256], index: 7, kind: output, shape index: {}]
  %s8 = sld [smem:[#allocation0]]
  $region61: #{_attention_block_impl.1} parent=0
    _
  %s10 = ssub.s32 1, %s8
  %s11 = scalar_select 0, %s10, %s8
  %12 = sst [smem:[#allocation2]] %s6
  loop: start=0, step=1, limit=4
  $region2: #{_attention_block_impl.1} parent=0 // loop_pre_header
    _
  $region3: #{_attention_block_impl.1} parent=0 // loop_header
    %s14 = sphi 0, %s18
    %p15 = scmp.ge.s32.totalorder %s14, 4
    %s21 = sphi 0, %s33
    %s22 = sphi 0, %s29
    %s23 = sphi 0, %s21
    %s24 = sphi 0, %s22
    %s25 = sphi 0, %s23
    %s26 = sphi 0, %s24
    %s38 = sphi 0, %s40
    %s41 = sphi 0, %s38
    %s42 = sphi 0, %s41
    %s58 = sphi 0, %s42
    %s66 = sphi 0, %s68
    %s69 = sphi 0, %s66
    %s70 = sphi 0, %s69
    %s86 = sphi 0, %s70
    %s90 = sphi 0, %s90
    %s92 = sphi 0, %s90
    %s93 = sphi 0, %s92
    %s107 = sphi 0, %s93
    %s111 = sphi 0, %s111
    %s113 = sphi 0, %s111
    %s114 = sphi 0, %s113
    %s128 = sphi 0, %s114
    %s132 = sphi 0, %s132
    %s134 = sphi 0, %s132
    %s135 = sphi 0, %s134
    %s149 = sphi 0, %s135
    %s153 = sphi 0, %s153
    %s155 = sphi 0, %s153
    %s156 = sphi 0, %s155
    %s170 = sphi 0, %s156
    %s174 = sphi 0, %s174
    %s176 = sphi 0, %s174
    %s177 = sphi 0, %s176
    %s191 = sphi 0, %s177
    %s199 = sphi 0, %s201
    %s202 = sphi 0, %s199
    %s203 = sphi 0, %s202
    %s219 = sphi 0, %s203
  $region4: #{_attention_block_impl.1} parent=0 // loop_header_branch
    %17 = sbr.rel (%p15) target = $region8
  $region5: #{_attention_block_impl.1} parent=0 // loop_body
    %s19 = ssub.s32 %s14, 1
    %s20 = ssub.s32 %s14, 2
    %s27 = sadd.s32 1, %s22
    %p28 = scmp.ge.s32.totalorder %s27, 1
    %s29 = scalar_select %p28, 0, %s27
    %s30 = sadd.s32 1, %s21
    %s31 = scalar_select %p28, %s30, %s21
    %p32 = scmp.ge.s32.totalorder %s31, 2
    %s33 = scalar_select %p32, 0, %s31
    %s34 = ssub.s32 %s21, %s33
    %s35 = ssub.s32 %s22, %s29
    %s36 = sor.u32 %s34, %s35
    %p37 = scmp.eq.s32.totalorder %s36, 0
    %s39 = sadd.s32 %s38, 1
    %s40 = scalar_select %p37, %s38, %s39
    %p43 = pneg %p37
    %p44 = scmp.eq.s32.totalorder %s14, 1
    %p45 = por %p43, %p44
    %p46 = scmp.ne.s32.totalorder %s38, %s41
    %p47 = scmp.eq.s32.totalorder %s14, 0
    %p48 = por %p46, %p47
    %p49 = scmp.ne.s32.totalorder %s38, %s41
    %p50 = scmp.eq.s32.totalorder %s19, 1
    %p51 = por %p49, %p50
    %p52 = scmp.ne.s32.totalorder %s41, %s42
    %p53 = scmp.eq.s32.totalorder %s19, 0
    %p54 = por %p52, %p53
    %p55 = scmp.ne.s32.totalorder %s41, %s42
    %p56 = scmp.eq.s32.totalorder %s20, 1
    %p57 = por %p55, %p56
    %p59 = scmp.ne.s32.totalorder %s42, %s58
    %p60 = scmp.eq.s32.totalorder %s20, 0
    %p61 = por %p59, %p60
    %s62 = ssub.s32 %s21, %s33
    %s63 = ssub.s32 %s22, %s29
    %s64 = sor.u32 %s62, %s63
    %p65 = scmp.eq.s32.totalorder %s64, 0
    %s67 = sadd.s32 %s66, 1
    %s68 = scalar_select %p65, %s66, %s67
    %p71 = pneg %p65
    %p72 = scmp.eq.s32.totalorder %s14, 1
    %p73 = por %p71, %p72
    %p74 = scmp.ne.s32.totalorder %s66, %s69
    %p75 = scmp.eq.s32.totalorder %s14, 0
    %p76 = por %p74, %p75
    %p77 = scmp.ne.s32.totalorder %s66, %s69
    %p78 = scmp.eq.s32.totalorder %s19, 1
    %p79 = por %p77, %p78
    %p80 = scmp.ne.s32.totalorder %s69, %s70
    %p81 = scmp.eq.s32.totalorder %s19, 0
    %p82 = por %p80, %p81
    %p83 = scmp.ne.s32.totalorder %s69, %s70
    %p84 = scmp.eq.s32.totalorder %s20, 1
    %p85 = por %p83, %p84
    %p87 = scmp.ne.s32.totalorder %s70, %s86
    %p88 = scmp.eq.s32.totalorder %s20, 0
    %p89 = por %p87, %p88
    %s91 = sadd.s32 %s90, 1
    %p94 = scmp.eq.s32.totalorder %s14, 1
    %p95 = scmp.ne.s32.totalorder %s90, %s92
    %p96 = scmp.eq.s32.totalorder %s14, 0
    %p97 = por %p95, %p96
    %p98 = scmp.ne.s32.totalorder %s90, %s92
    %p99 = scmp.eq.s32.totalorder %s19, 1
    %p100 = por %p98, %p99
    %p101 = scmp.ne.s32.totalorder %s92, %s93
    %p102 = scmp.eq.s32.totalorder %s19, 0
    %p103 = por %p101, %p102
    %p104 = scmp.ne.s32.totalorder %s92, %s93
    %p105 = scmp.eq.s32.totalorder %s20, 1
    %p106 = por %p104, %p105
    %p108 = scmp.ne.s32.totalorder %s93, %s107
    %p109 = scmp.eq.s32.totalorder %s20, 0
    %p110 = por %p108, %p109
    %s112 = sadd.s32 %s111, 1
    %p115 = scmp.eq.s32.totalorder %s14, 1
    %p116 = scmp.ne.s32.totalorder %s111, %s113
    %p117 = scmp.eq.s32.totalorder %s14, 0
    %p118 = por %p116, %p117
    %p119 = scmp.ne.s32.totalorder %s111, %s113
    %p120 = scmp.eq.s32.totalorder %s19, 1
    %p121 = por %p119, %p120
    %p122 = scmp.ne.s32.totalorder %s113, %s114
    %p123 = scmp.eq.s32.totalorder %s19, 0
    %p124 = por %p122, %p123
    %p125 = scmp.ne.s32.totalorder %s113, %s114
    %p126 = scmp.eq.s32.totalorder %s20, 1
    %p127 = por %p125, %p126
    %p129 = scmp.ne.s32.totalorder %s114, %s128
    %p130 = scmp.eq.s32.totalorder %s20, 0
    %p131 = por %p129, %p130
    %s133 = sadd.s32 %s132, 1
    %p136 = scmp.eq.s32.totalorder %s14, 1
    %p137 = scmp.ne.s32.totalorder %s132, %s134
    %p138 = scmp.eq.s32.totalorder %s14, 0
    %p139 = por %p137, %p138
    %p140 = scmp.ne.s32.totalorder %s132, %s134
    %p141 = scmp.eq.s32.totalorder %s19, 1
    %p142 = por %p140, %p141
    %p143 = scmp.ne.s32.totalorder %s134, %s135
    %p144 = scmp.eq.s32.totalorder %s19, 0
    %p145 = por %p143, %p144
    %p146 = scmp.ne.s32.totalorder %s134, %s135
    %p147 = scmp.eq.s32.totalorder %s20, 1
    %p148 = por %p146, %p147
    %p150 = scmp.ne.s32.totalorder %s135, %s149
    %p151 = scmp.eq.s32.totalorder %s20, 0
    %p152 = por %p150, %p151
    %s154 = sadd.s32 %s153, 1
    %p157 = scmp.eq.s32.totalorder %s14, 1
    %p158 = scmp.ne.s32.totalorder %s153, %s155
    %p159 = scmp.eq.s32.totalorder %s14, 0
    %p160 = por %p158, %p159
    %p161 = scmp.ne.s32.totalorder %s153, %s155
    %p162 = scmp.eq.s32.totalorder %s19, 1
    %p163 = por %p161, %p162
    %p164 = scmp.ne.s32.totalorder %s155, %s156
    %p165 = scmp.eq.s32.totalorder %s19, 0
    %p166 = por %p164, %p165
    %p167 = scmp.ne.s32.totalorder %s155, %s156
    %p168 = scmp.eq.s32.totalorder %s20, 1
    %p169 = por %p167, %p168
    %p171 = scmp.ne.s32.totalorder %s156, %s170
    %p172 = scmp.eq.s32.totalorder %s20, 0
    %p173 = por %p171, %p172
    %s175 = sadd.s32 %s174, 1
    %p178 = scmp.eq.s32.totalorder %s14, 1
    %p179 = scmp.ne.s32.totalorder %s174, %s176
    %p180 = scmp.eq.s32.totalorder %s14, 0
    %p181 = por %p179, %p180
    %p182 = scmp.ne.s32.totalorder %s174, %s176
    %p183 = scmp.eq.s32.totalorder %s19, 1
    %p184 = por %p182, %p183
    %p185 = scmp.ne.s32.totalorder %s176, %s177
    %p186 = scmp.eq.s32.totalorder %s19, 0
    %p187 = por %p185, %p186
    %p188 = scmp.ne.s32.totalorder %s176, %s177
    %p189 = scmp.eq.s32.totalorder %s20, 1
    %p190 = por %p188, %p189
    %p192 = scmp.ne.s32.totalorder %s177, %s191
    %p193 = scmp.eq.s32.totalorder %s20, 0
    %p194 = por %p192, %p193
    %s195 = ssub.s32 %s21, %s33
    %s196 = ssub.s32 %s22, %s29
    %s197 = sor.u32 %s195, %s196
    %p198 = scmp.eq.s32.totalorder %s197, 0
    %s200 = sadd.s32 %s199, 1
    %s201 = scalar_select %p198, %s199, %s200
    %p204 = pneg %p198
    %p205 = scmp.eq.s32.totalorder %s14, 1
    %p206 = por %p204, %p205
    %p207 = scmp.ne.s32.totalorder %s199, %s202
    %p208 = scmp.eq.s32.totalorder %s14, 0
    %p209 = por %p207, %p208
    %p210 = scmp.ne.s32.totalorder %s199, %s202
    %p211 = scmp.eq.s32.totalorder %s19, 1
    %p212 = por %p210, %p211
    %p213 = scmp.ne.s32.totalorder %s202, %s203
    %p214 = scmp.eq.s32.totalorder %s19, 0
    %p215 = por %p213, %p214
    %p216 = scmp.ne.s32.totalorder %s202, %s203
    %p217 = scmp.eq.s32.totalorder %s20, 1
    %p218 = por %p216, %p217
    %p220 = scmp.ne.s32.totalorder %s203, %s219
    %p221 = scmp.eq.s32.totalorder %s20, 0
    %p222 = por %p220, %p221
    %p223 = scmp.le.s32.totalorder 1, %s14
    %p224 = scmp.lt.s32.totalorder %s14, 3
    %p225 = pnand %p223, %p224
    %p226 = pneg %p225
    // Predicated region
    $region9: #{_attention_block_impl.1} parent=5 // pred_check
      _
    $region10: #{_attention_block_impl.1} parent=5 // pred_check_branch
      %228 = sbr.rel (%p225) target = $region12
    $region11: #{_attention_block_impl.1} parent=5 // pred_region
      %s229 = ssub.s32 %s14, 1
      // Predicated region
      $region13: #{_attention_block_impl.1} parent=11 // pred_check
        %p230 = pneg %p103
      $region14: #{_attention_block_impl.1} parent=11 // pred_check_branch
        %232 = sbr.rel (%p230) target = $region16
      $region15: #{_attention_block_impl.1} parent=11 // pred_region
        _
      $region16: #{_attention_block_impl.1} parent=11 // pred_fallthru
        _
      // Predicated region
      $region17: #{_attention_block_impl.1} parent=11 // pred_check
        %p233 = pneg %p124
      $region18: #{_attention_block_impl.1} parent=11 // pred_check_branch
        %235 = sbr.rel (%p233) target = $region20
      $region19: #{_attention_block_impl.1} parent=11 // pred_region
        _
      $region20: #{_attention_block_impl.1} parent=11 // pred_fallthru
        _
      // Predicated region
      $region21: #{_attention_block_impl.1} parent=11 // pred_check
        %p236 = pneg %p145
      $region22: #{_attention_block_impl.1} parent=11 // pred_check_branch
        %238 = sbr.rel (%p236) target = $region24
      $region23: #{_attention_block_impl.1} parent=11 // pred_region
        _
      $region24: #{_attention_block_impl.1} parent=11 // pred_fallthru
        _
      // Predicated region
      $region25: #{_attention_block_impl.1} parent=11 // pred_check
        %p239 = pneg %p166
      $region26: #{_attention_block_impl.1} parent=11 // pred_check_branch
        %241 = sbr.rel (%p239) target = $region28
      $region27: #{_attention_block_impl.1} parent=11 // pred_region
        _
      $region28: #{_attention_block_impl.1} parent=11 // pred_fallthru
        _
      // Predicated region
      $region29: #{_attention_block_impl.1} parent=11 // pred_check
        %p242 = pneg %p187
      $region30: #{_attention_block_impl.1} parent=11 // pred_check_branch
        %244 = sbr.rel (%p242) target = $region32
      $region31: #{_attention_block_impl.1} parent=11 // pred_region
        _
      $region32: #{_attention_block_impl.1} parent=11 // pred_fallthru
        _
    $region12: #{_attention_block_impl.1} parent=5 // pred_fallthru
      _
    %p245 = scmp.lt.s32.totalorder %s14, 2
    // Predicated region
    $region33: #{_attention_block_impl.1} parent=5 // pred_check
      %p246 = pneg %p245
    $region34: #{_attention_block_impl.1} parent=5 // pred_check_branch
      %248 = sbr.rel (%p246) target = $region36
    $region35: #{_attention_block_impl.1} parent=5 // pred_region
      // Predicated region
      $region37: #{_attention_block_impl.1} parent=35 // pred_check
        %p249 = pneg %p48
      $region38: #{_attention_block_impl.1} parent=35 // pred_check_branch
        %251 = sbr.rel (%p249) target = $region40
      $region39: #{_attention_block_impl.1} parent=35 // pred_region
        %s252 = smul.u32 2, %s22
        %p253 = scmp.lt.s32.totalorder %s21, 1
        %s254 = scalar_select %p253, %s21, 1
        %p255 = scmp.lt.s32.totalorder %s252, 1
        %s256 = scalar_select %p255, %s252, 1
        %s257 = smul.addr %s254, 2
        %s258 = sadd.s32 %s256, %s257
        %s259 = smul.addr %s258, 4
        %s260 = scalar_lea.vmem %s0, %s259
        %s261 = smul.u32 2, %s22
      $region40: #{_attention_block_impl.1} parent=35 // pred_fallthru
        _
      // Predicated region
      $region41: #{_attention_block_impl.1} parent=35 // pred_check
        %p262 = pneg %p76
      $region42: #{_attention_block_impl.1} parent=35 // pred_check_branch
        %264 = sbr.rel (%p262) target = $region44
      $region43: #{_attention_block_impl.1} parent=35 // pred_region
        %s265 = smul.u32 2, %s22
        %p266 = scmp.lt.s32.totalorder %s21, 1
        %s267 = scalar_select %p266, %s21, 1
        %p268 = scmp.lt.s32.totalorder %s265, 1
        %s269 = scalar_select %p268, %s265, 1
        %s270 = smul.addr %s267, 2
        %s271 = sadd.s32 %s269, %s270
        %s272 = smul.addr %s271, 4
        %s273 = scalar_lea.vmem %s1, %s272
        %s274 = smul.u32 2, %s22
      $region44: #{_attention_block_impl.1} parent=35 // pred_fallthru
        _
    $region36: #{_attention_block_impl.1} parent=5 // pred_fallthru
      _
    %p275 = scmp.le.s32.totalorder 1, %s14
    %p276 = scmp.lt.s32.totalorder %s14, 3
    %p277 = pnand %p275, %p276
    %p278 = pneg %p277
    // Predicated region
    $region45: #{_attention_block_impl.1} parent=5 // pred_check
      _
    $region46: #{_attention_block_impl.1} parent=5 // pred_check_branch
      %280 = sbr.rel (%p277) target = $region48
    $region47: #{_attention_block_impl.1} parent=5 // pred_region
      %s281 = ssub.s32 %s14, 1
      %s282 = smul.u32 2, %s24
      %p283 = scmp.lt.s32.totalorder %s23, 1
      %s284 = scalar_select %p283, %s23, 1
      %p285 = scmp.lt.s32.totalorder %s282, 1
      %s286 = scalar_select %p285, %s282, 1
      %s287 = smul.addr %s284, 2
      %s288 = sadd.s32 %s286, %s287
      %s289 = smul.addr %s288, 4
      %s290 = scalar_lea.vmem %s0, %s289
      %p291 = pneg %p54
      %p292 = pneg %p51
      %s293 = smul.u32 2, %s24
      %p294 = scmp.lt.s32.totalorder %s23, 1
      %s295 = scalar_select %p294, %s23, 1
      %p296 = scmp.lt.s32.totalorder %s293, 1
      %s297 = scalar_select %p296, %s293, 1
      %s298 = smul.addr %s295, 2
      %s299 = sadd.s32 %s297, %s298
      %s300 = smul.addr %s299, 4
      %s301 = scalar_lea.vmem %s1, %s300
      %p302 = pneg %p82
      %p303 = pneg %p79
      %p304 = pneg %p103
      %p305 = pneg %p100
      %p306 = pneg %p124
      %p307 = pneg %p121
      %p308 = pneg %p145
      %p309 = pneg %p142
      %p310 = pneg %p166
      %p311 = pneg %p163
      %p312 = pneg %p187
      %p313 = pneg %p184
      %p314 = pneg %p215
      %p315 = pneg %p212
      %s316 = smul.u32 2, %s24
      %p317 = scmp.lt.s32.totalorder %s23, 1
      %s318 = scalar_select %p317, %s23, 1
      %p319 = scmp.lt.s32.totalorder %s316, 1
      %s320 = scalar_select %p319, %s316, 1
      %s321 = smul.addr %s318, 2
      %s322 = sadd.s32 %s320, %s321
      %s323 = smul.addr %s322, 4
      %s324 = scalar_lea.vmem %s7, %s323
      %s325 = smul.u32 2, %s24
      %p326 = scmp.lt.s32.totalorder %s23, 1
      %s327 = scalar_select %p326, %s23, 1
      %p328 = scmp.lt.s32.totalorder %s325, 1
      %s329 = scalar_select %p328, %s325, 1
      %s330 = smul.addr %s327, 2
      %s331 = sadd.s32 %s329, %s330
      %s332 = smul.addr %s331, 4
      %s333 = scalar_lea.vmem %s0, %s332
      %s334 = smul.u32 2, %s24
      %s335 = smul.u32 2, %s24
      %p336 = scmp.lt.s32.totalorder %s23, 1
      %s337 = scalar_select %p336, %s23, 1
      %p338 = scmp.lt.s32.totalorder %s335, 1
      %s339 = scalar_select %p338, %s335, 1
      %s340 = smul.addr %s337, 2
      %s341 = sadd.s32 %s339, %s340
      %s342 = smul.addr %s341, 4
      %s343 = scalar_lea.vmem %s1, %s342
      %s344 = smul.u32 2, %s24
      %s345 = smul.u32 2, %s24
      %p346 = scmp.lt.s32.totalorder %s23, 1
      %s347 = scalar_select %p346, %s23, 1
      %p348 = scmp.lt.s32.totalorder %s345, 1
      %s349 = scalar_select %p348, %s345, 1
      %s350 = smul.addr %s347, 2
      %s351 = sadd.s32 %s349, %s350
      %s352 = smul.addr %s351, 4
      %s353 = scalar_lea.vmem %s7, %s352
      %s354 = smul.u32 2, %s24
      %v355 = vld [vmem:[%s4] sm:$0xff]
      %v356 = vld [vmem:[%s5] sm:$0xff]
      %s357 = sld [smem:[#allocation2]]
      %v358 = vld [vmem:[%s333] sm:$0xff]
      %v359 = vld [vmem:[%s343] sm:$0xff]
      %v360 = vld [vmem:[%s2] sm:$0xff]
      %v361 = vld [vmem:[%s3] sm:$0xff]
      %v363 = vcombine.high %v359, %v359
      %vm364 = vcmask 31744
      %v366 = vsel %vm364, %v361, 0
      %vm368 = vcmask 1043456
      %v369 = vsel %vm368, %v359, 0
      %v371 = vsel %vm368, %v363, 0
      %373 = vmatprep.subr.mxu0 0.0
      %374 = vmatpush1.msra.mxu0 0.0
      %375 = vmatprep.subr.mxu0 0.0
      %376 = vmatpush1.msra.mxu0 0.0
      %377 = vmatprep.subr.mxu0 0.0
      %378 = vmatpush1.msra.mxu0 0.0
      %379 = vmatprep.subr.mxu0 0.0
      %380 = vmatpush1.msra.mxu0 0.0
      %381 = vmatprep.subr.mxu0 0.0
      %382 = vmatpush1.msra.mxu0 0.0
      %383 = vmatprep.subr.mxu0 0.0
      %384 = vmatpush1.msra.mxu0 0.0
      %385 = vmatprep.subr.mxu0 0.0
      %386 = vmatpush1.msra.mxu0 0.0
      %387 = vmatprep.subr.mxu0 0.0
      %388 = vmatpush1.msra.mxu0 0.0
      %389 = vmatprep.subr.mxu0 0.0
      %390 = vmatpush1.msra.mxu0 0.0
      %391 = vmatprep.subr.mxu0 0.0
      %392 = vmatpush1.msra.mxu0 0.0
      %393 = vmatprep.subr.mxu0 0.0
      %394 = vmatpush1.msra.mxu0 0.0
      %395 = vmatprep.subr.mxu0 0.0
      %396 = vmatpush1.msra.mxu0 0.0
      %397 = vmatprep.subr.mxu0 0.0
      %398 = vmatpush1.msra.mxu0 0.0
      %399 = vmatprep.subr.mxu0 0.0
      %400 = vmatpush1.msra.mxu0 0.0
      %401 = vmatprep.subr.mxu0 0.0
      %402 = vmatpush1.msra.mxu0 0.0
      %403 = vmatprep.subr.mxu0 %v371
      %404 = vmatpush1.msra.mxu0 %v369
      %405 = vmatprep.subr.mxu0 0.0
      %406 = vmatpush2.msra.mxu0 0.0
      %407 = vmatprep.subr.mxu0 0.0
      %408 = vmatpush2.msra.mxu0 0.0
      %409 = vmatprep.subr.mxu0 0.0
      %410 = vmatpush2.msra.mxu0 0.0
      %411 = vmatprep.subr.mxu0 0.0
      %412 = vmatpush2.msra.mxu0 0.0
      %413 = vmatprep.subr.mxu0 0.0
      %414 = vmatpush2.msra.mxu0 0.0
      %415 = vmatprep.subr.mxu0 0.0
      %416 = vmatpush2.msra.mxu0 0.0
      %417 = vmatprep.subr.mxu0 0.0
      %418 = vmatpush2.msra.mxu0 0.0
      %419 = vmatprep.subr.mxu0 0.0
      %420 = vmatpush2.msra.mxu0 0.0
      %421 = vmatprep.subr.mxu0 0.0
      %422 = vmatpush2.msra.mxu0 0.0
      %423 = vmatprep.subr.mxu0 0.0
      %424 = vmatpush2.msra.mxu0 0.0
      %425 = vmatprep.subr.mxu0 0.0
      %426 = vmatpush2.msra.mxu0 0.0
      %427 = vmatprep.subr.mxu0 0.0
      %428 = vmatpush2.msra.mxu0 0.0
      %429 = vmatprep.subr.mxu0 0.0
      %430 = vmatpush2.msra.mxu0 0.0
      %431 = vmatprep.subr.mxu0 0.0
      %432 = vmatpush2.msra.mxu0 0.0
      %433 = vmatprep.subr.mxu0 0.0
      %434 = vmatpush2.msra.mxu0 0.0
      %435 = vmatprep.subr.mxu0 0.0
      %436 = vmatpush2.msra.mxu0 0.0
      %437 = vmatprep.mubr.f32.mxu0 0.0
      %438 = vmatmul.mubr.f32.gmra.mxu0 %v366
      %v439 = vpop.f32.mrf.mxu0
      %v440 = vadd.f32 0.0, %v439
      %v441 = vpop.f32.mrf.mxu0
      %v442 = vadd.f32 0.0, %v441
      %443 = vdwg.mxu0
      %v445 = vcombine.high %v358, %v358
      %v447 = vsel %vm364, %v360, 0
      %v449 = vsel %vm368, %v358, 0
      %v451 = vsel %vm368, %v445, 0
      %453 = vmatprep.subr.mxu0 0.0
      %454 = vmatpush1.msra.mxu0 0.0
      %455 = vmatprep.subr.mxu0 0.0
      %456 = vmatpush1.msra.mxu0 0.0
      %457 = vmatprep.subr.mxu0 0.0
      %458 = vmatpush1.msra.mxu0 0.0
      %459 = vmatprep.subr.mxu0 0.0
      %460 = vmatpush1.msra.mxu0 0.0
      %461 = vmatprep.subr.mxu0 0.0
      %462 = vmatpush1.msra.mxu0 0.0
      %463 = vmatprep.subr.mxu0 0.0
      %464 = vmatpush1.msra.mxu0 0.0
      %465 = vmatprep.subr.mxu0 0.0
      %466 = vmatpush1.msra.mxu0 0.0
      %467 = vmatprep.subr.mxu0 0.0
      %468 = vmatpush1.msra.mxu0 0.0
      %469 = vmatprep.subr.mxu0 0.0
      %470 = vmatpush1.msra.mxu0 0.0
      %471 = vmatprep.subr.mxu0 0.0
      %472 = vmatpush1.msra.mxu0 0.0
      %473 = vmatprep.subr.mxu0 0.0
      %474 = vmatpush1.msra.mxu0 0.0
      %475 = vmatprep.subr.mxu0 0.0
      %476 = vmatpush1.msra.mxu0 0.0
      %477 = vmatprep.subr.mxu0 0.0
      %478 = vmatpush1.msra.mxu0 0.0
      %479 = vmatprep.subr.mxu0 0.0
      %480 = vmatpush1.msra.mxu0 0.0
      %481 = vmatprep.subr.mxu0 0.0
      %482 = vmatpush1.msra.mxu0 0.0
      %483 = vmatprep.subr.mxu0 %v451
      %484 = vmatpush1.msra.mxu0 %v449
      %485 = vmatprep.subr.mxu0 0.0
      %486 = vmatpush2.msra.mxu0 0.0
      %487 = vmatprep.subr.mxu0 0.0
      %488 = vmatpush2.msra.mxu0 0.0
      %489 = vmatprep.subr.mxu0 0.0
      %490 = vmatpush2.msra.mxu0 0.0
      %491 = vmatprep.subr.mxu0 0.0
      %492 = vmatpush2.msra.mxu0 0.0
      %493 = vmatprep.subr.mxu0 0.0
      %494 = vmatpush2.msra.mxu0 0.0
      %495 = vmatprep.subr.mxu0 0.0
      %496 = vmatpush2.msra.mxu0 0.0
      %497 = vmatprep.subr.mxu0 0.0
      %498 = vmatpush2.msra.mxu0 0.0
      %499 = vmatprep.subr.mxu0 0.0
      %500 = vmatpush2.msra.mxu0 0.0
      %501 = vmatprep.subr.mxu0 0.0
      %502 = vmatpush2.msra.mxu0 0.0
      %503 = vmatprep.subr.mxu0 0.0
      %504 = vmatpush2.msra.mxu0 0.0
      %505 = vmatprep.subr.mxu0 0.0
      %506 = vmatpush2.msra.mxu0 0.0
      %507 = vmatprep.subr.mxu0 0.0
      %508 = vmatpush2.msra.mxu0 0.0
      %509 = vmatprep.subr.mxu0 0.0
      %510 = vmatpush2.msra.mxu0 0.0
      %511 = vmatprep.subr.mxu0 0.0
      %512 = vmatpush2.msra.mxu0 0.0
      %513 = vmatprep.subr.mxu0 0.0
      %514 = vmatpush2.msra.mxu0 0.0
      %515 = vmatprep.subr.mxu0 0.0
      %516 = vmatpush2.msra.mxu0 0.0
      %517 = vmatprep.mubr.f32.mxu0 0.0
      %518 = vmatmul.mubr.f32.gmra.mxu0 %v447
      %v519 = vpop.f32.mrf.mxu0
      %v520 = vadd.f32 %v440, %v519
      %v521 = vpop.f32.mrf.mxu0
      %v522 = vadd.f32 %v442, %v521
      %523 = vdwg.mxu0
      %525 = vset.pattern.permute.xlu0 0
      %526 = vperm.xlu0 %525, %v355
      %v527 = vpop.permute.xlu0 %526
      %v529 = vadd.f32 %v520, %v527
      %v530 = vadd.f32 %v522, %v527
      %v531 = vmax.f32 %v529, 0.0
      %v532 = vmax.f32 %v530, 0.0
      %534 = vset.pattern.permute.xlu0 0
      %535 = vperm.xlu0 %534, %v356
      %v536 = vpop.permute.xlu0 %535
      %v538 = vmul.f32 %v531, %v536
      %v539 = vmul.f32 %v532, %v536
      %v540 = vrot.slane %v538, 4
      %v541 = vadd.f32 %v538, %v540
      %v542 = vrot.slane %v541, 2
      %v543 = vadd.f32 %v541, %v542
      %v544 = vrot.slane %v543, 1
      %v545 = vadd.f32 %v543, %v544
      %v546 = vrot.slane %v539, 4
      %v547 = vadd.f32 %v539, %v546
      %v548 = vrot.slane %v547, 2
      %v549 = vadd.f32 %v547, %v548
      %v550 = vrot.slane %v549, 1
      %v551 = vadd.f32 %v549, %v550
      %v552 = vstv %s357
      %v553 = vadd.f32 %v545, %v552
      %v554 = vadd.f32 %v551, %v552
      %v555 = vxor.u32 %v553, 2147483648
      %v556 = vxor.u32 %v554, 2147483648
      %v557 = vmul.f32 %v555, 1.442695
      %v558 = vpow.pop %v557
      %v559 = vmul.f32 %v556, 1.442695
      %v560 = vpow.pop %v559
      %v561 = vadd.f32 %v558, 1.0
      %v562 = vadd.f32 %v560, 1.0
      %v563 = vrcp.pop %v561
      %v564 = vmul.f32 1.0, %v563
      %v565 = vrcp.pop %v562
      %v566 = vmul.f32 1.0, %v565
      %v569 = vcombine.low %v564, %v566
      %v571 = vmul.f32 %v359, %v569
      %572 = vst [vmem:[%s353] sm:$0xff] %v571
      %s573 = smul.u32 2, %s24
      %p574 = scmp.lt.s32.totalorder %s23, 1
      %s575 = scalar_select %p574, %s23, 1
      %p576 = scmp.lt.s32.totalorder %s573, 1
      %s577 = scalar_select %p576, %s573, 1
      %s578 = smul.addr %s575, 2
      %s579 = sadd.s32 %s577, %s578
      %s580 = smul.addr %s579, 4
      %s581 = scalar_lea.vmem %s7, %s580
      // Predicated region
      $region49: #{_attention_block_impl.1} parent=47 // pred_check
        %p582 = pneg %p212
      $region50: #{_attention_block_impl.1} parent=47 // pred_check_branch
        %584 = sbr.rel (%p582) target = $region52
      $region51: #{_attention_block_impl.1} parent=47 // pred_region
        %s585 = smul.u32 2, %s24
      $region52: #{_attention_block_impl.1} parent=47 // pred_fallthru
        _
    $region48: #{_attention_block_impl.1} parent=5 // pred_fallthru
      _
    %p586 = scmp.le.s32.totalorder 2, %s14
    // Predicated region
    $region53: #{_attention_block_impl.1} parent=5 // pred_check
      %p587 = pneg %p586
    $region54: #{_attention_block_impl.1} parent=5 // pred_check_branch
      %589 = sbr.rel (%p587) target = $region56
    $region55: #{_attention_block_impl.1} parent=5 // pred_region
      %s590 = ssub.s32 %s14, 2
      // Predicated region
      $region57: #{_attention_block_impl.1} parent=55 // pred_check
        %p591 = pneg %p218
      $region58: #{_attention_block_impl.1} parent=55 // pred_check_branch
        %593 = sbr.rel (%p591) target = $region60
      $region59: #{_attention_block_impl.1} parent=55 // pred_region
        %s594 = smul.u32 2, %s26
        %p595 = scmp.lt.s32.totalorder %s25, 1
        %s596 = scalar_select %p595, %s25, 1
        %p597 = scmp.lt.s32.totalorder %s594, 1
        %s598 = scalar_select %p597, %s594, 1
        %s599 = smul.addr %s596, 2
        %s600 = sadd.s32 %s598, %s599
        %s601 = smul.addr %s600, 4
        %s602 = scalar_lea.vmem %s7, %s601
      $region60: #{_attention_block_impl.1} parent=55 // pred_fallthru
        _
    $region56: #{_attention_block_impl.1} parent=5 // pred_fallthru
      _
  $region6: #{_attention_block_impl.1} parent=0 // loop_footer
    %s18 = sadd.s32 1, %s14
  $region7: #{_attention_block_impl.1} parent=0 // loop_footer_branch
    %13 = sbr.rel target = $region3
  $region8: #{_attention_block_impl.1} parent=0 // loop_exit
    _

// kernel: _attention_block_impl.1
$region0: #{_attention_block_impl.1}
  #allocation0 [shape = 'u32[]', space=smem, size = 0x4, offset = 0x4, fixed_abs, tag = 'smem constant byte address 0x4 - core index']
  #allocation1 [shape = 'u32[144,128]{1,0:T(1,128)}', space=vmem, size = 0x12000, scoped, tag = 'internal scratch']
  #allocation2 [shape = 'f32[1,1]{1,0:T(1,128)S(1)}', space=vmem, size = 0x200, scoped, tag = 'scoped memory for _attention_block_impl.1']
  %s0 = inlined_call_operand.vmem [shape: f32[2,4,256], index: 0, kind: input, shape index: {}]
  %s1 = inlined_call_operand.vmem [shape: f32[2,4,256], index: 1, kind: input, shape index: {}]
  %s2 = inlined_call_operand.vmem [shape: f32[8,4], index: 2, kind: input, shape index: {}]
  %s3 = inlined_call_operand.vmem [shape: f32[8,4], index: 3, kind: input, shape index: {}]
  %s4 = inlined_call_operand.vmem [shape: f32[8,1], index: 4, kind: input, shape index: {}]
  %s5 = inlined_call_operand.vmem [shape: f32[8,1], index: 5, kind: input, shape index: {}]
  %s6 = inlined_call_operand.<no memory space> [shape: f32[1,1], index: 6, kind: input, shape index: {}]
  %s7 = inlined_call_operand.vmem [shape: f32[2,4,256], index: 7, kind: output, shape index: {}]
  %s8 = sld [smem:[#allocation0]]
  $region61: #{_attention_block_impl.1} parent=0
    _
  %s10 = ssub.s32 1, %s8
  %s11 = scalar_select 0, %s10, %s8
  %v12 = vstv %s6
  %13 = vst [vmem:[#allocation2] sm:$0x1] %v12
  loop: start=0, step=1, limit=4
  $region2: #{_attention_block_impl.1} parent=0 // loop_pre_header
    _
  $region3: #{_attention_block_impl.1} parent=0 // loop_header
    %s15 = sphi 0, %s19
    %p16 = scmp.ge.s32.totalorder %s15, 4
    %s22 = sphi 0, %s34
    %s23 = sphi 0, %s30
    %s24 = sphi 0, %s22
    %s25 = sphi 0, %s23
    %s26 = sphi 0, %s24
    %s27 = sphi 0, %s25
    %s39 = sphi 0, %s41
    %s42 = sphi 0, %s39
    %s43 = sphi 0, %s42
    %s59 = sphi 0, %s43
    %s67 = sphi 0, %s69
    %s70 = sphi 0, %s67
    %s71 = sphi 0, %s70
    %s87 = sphi 0, %s71
    %s91 = sphi 0, %s91
    %s93 = sphi 0, %s91
    %s94 = sphi 0, %s93
    %s108 = sphi 0, %s94
    %s112 = sphi 0, %s112
    %s114 = sphi 0, %s112
    %s115 = sphi 0, %s114
    %s129 = sphi 0, %s115
    %s133 = sphi 0, %s133
    %s135 = sphi 0, %s133
    %s136 = sphi 0, %s135
    %s150 = sphi 0, %s136
    %s154 = sphi 0, %s154
    %s156 = sphi 0, %s154
    %s157 = sphi 0, %s156
    %s171 = sphi 0, %s157
    %s175 = sphi 0, %s175
    %s177 = sphi 0, %s175
    %s178 = sphi 0, %s177
    %s192 = sphi 0, %s178
    %s200 = sphi 0, %s202
    %s203 = sphi 0, %s200
    %s204 = sphi 0, %s203
    %s220 = sphi 0, %s204
  $region4: #{_attention_block_impl.1} parent=0 // loop_header_branch
    %18 = sbr.rel (%p16) target = $region8
  $region5: #{_attention_block_impl.1} parent=0 // loop_body
    %s20 = ssub.s32 %s15, 1
    %s21 = ssub.s32 %s15, 2
    %s28 = sadd.s32 1, %s23
    %p29 = scmp.ge.s32.totalorder %s28, 1
    %s30 = scalar_select %p29, 0, %s28
    %s31 = sadd.s32 1, %s22
    %s32 = scalar_select %p29, %s31, %s22
    %p33 = scmp.ge.s32.totalorder %s32, 2
    %s34 = scalar_select %p33, 0, %s32
    %s35 = ssub.s32 %s22, %s34
    %s36 = ssub.s32 %s23, %s30
    %s37 = sor.u32 %s35, %s36
    %p38 = scmp.eq.s32.totalorder %s37, 0
    %s40 = sadd.s32 %s39, 1
    %s41 = scalar_select %p38, %s39, %s40
    %p44 = pneg %p38
    %p45 = scmp.eq.s32.totalorder %s15, 1
    %p46 = por %p44, %p45
    %p47 = scmp.ne.s32.totalorder %s39, %s42
    %p48 = scmp.eq.s32.totalorder %s15, 0
    %p49 = por %p47, %p48
    %p50 = scmp.ne.s32.totalorder %s39, %s42
    %p51 = scmp.eq.s32.totalorder %s20, 1
    %p52 = por %p50, %p51
    %p53 = scmp.ne.s32.totalorder %s42, %s43
    %p54 = scmp.eq.s32.totalorder %s20, 0
    %p55 = por %p53, %p54
    %p56 = scmp.ne.s32.totalorder %s42, %s43
    %p57 = scmp.eq.s32.totalorder %s21, 1
    %p58 = por %p56, %p57
    %p60 = scmp.ne.s32.totalorder %s43, %s59
    %p61 = scmp.eq.s32.totalorder %s21, 0
    %p62 = por %p60, %p61
    %s63 = ssub.s32 %s22, %s34
    %s64 = ssub.s32 %s23, %s30
    %s65 = sor.u32 %s63, %s64
    %p66 = scmp.eq.s32.totalorder %s65, 0
    %s68 = sadd.s32 %s67, 1
    %s69 = scalar_select %p66, %s67, %s68
    %p72 = pneg %p66
    %p73 = scmp.eq.s32.totalorder %s15, 1
    %p74 = por %p72, %p73
    %p75 = scmp.ne.s32.totalorder %s67, %s70
    %p76 = scmp.eq.s32.totalorder %s15, 0
    %p77 = por %p75, %p76
    %p78 = scmp.ne.s32.totalorder %s67, %s70
    %p79 = scmp.eq.s32.totalorder %s20, 1
    %p80 = por %p78, %p79
    %p81 = scmp.ne.s32.totalorder %s70, %s71
    %p82 = scmp.eq.s32.totalorder %s20, 0
    %p83 = por %p81, %p82
    %p84 = scmp.ne.s32.totalorder %s70, %s71
    %p85 = scmp.eq.s32.totalorder %s21, 1
    %p86 = por %p84, %p85
    %p88 = scmp.ne.s32.totalorder %s71, %s87
    %p89 = scmp.eq.s32.totalorder %s21, 0
    %p90 = por %p88, %p89
    %s92 = sadd.s32 %s91, 1
    %p95 = scmp.eq.s32.totalorder %s15, 1
    %p96 = scmp.ne.s32.totalorder %s91, %s93
    %p97 = scmp.eq.s32.totalorder %s15, 0
    %p98 = por %p96, %p97
    %p99 = scmp.ne.s32.totalorder %s91, %s93
    %p100 = scmp.eq.s32.totalorder %s20, 1
    %p101 = por %p99, %p100
    %p102 = scmp.ne.s32.totalorder %s93, %s94
    %p103 = scmp.eq.s32.totalorder %s20, 0
    %p104 = por %p102, %p103
    %p105 = scmp.ne.s32.totalorder %s93, %s94
    %p106 = scmp.eq.s32.totalorder %s21, 1
    %p107 = por %p105, %p106
    %p109 = scmp.ne.s32.totalorder %s94, %s108
    %p110 = scmp.eq.s32.totalorder %s21, 0
    %p111 = por %p109, %p110
    %s113 = sadd.s32 %s112, 1
    %p116 = scmp.eq.s32.totalorder %s15, 1
    %p117 = scmp.ne.s32.totalorder %s112, %s114
    %p118 = scmp.eq.s32.totalorder %s15, 0
    %p119 = por %p117, %p118
    %p120 = scmp.ne.s32.totalorder %s112, %s114
    %p121 = scmp.eq.s32.totalorder %s20, 1
    %p122 = por %p120, %p121
    %p123 = scmp.ne.s32.totalorder %s114, %s115
    %p124 = scmp.eq.s32.totalorder %s20, 0
    %p125 = por %p123, %p124
    %p126 = scmp.ne.s32.totalorder %s114, %s115
    %p127 = scmp.eq.s32.totalorder %s21, 1
    %p128 = por %p126, %p127
    %p130 = scmp.ne.s32.totalorder %s115, %s129
    %p131 = scmp.eq.s32.totalorder %s21, 0
    %p132 = por %p130, %p131
    %s134 = sadd.s32 %s133, 1
    %p137 = scmp.eq.s32.totalorder %s15, 1
    %p138 = scmp.ne.s32.totalorder %s133, %s135
    %p139 = scmp.eq.s32.totalorder %s15, 0
    %p140 = por %p138, %p139
    %p141 = scmp.ne.s32.totalorder %s133, %s135
    %p142 = scmp.eq.s32.totalorder %s20, 1
    %p143 = por %p141, %p142
    %p144 = scmp.ne.s32.totalorder %s135, %s136
    %p145 = scmp.eq.s32.totalorder %s20, 0
    %p146 = por %p144, %p145
    %p147 = scmp.ne.s32.totalorder %s135, %s136
    %p148 = scmp.eq.s32.totalorder %s21, 1
    %p149 = por %p147, %p148
    %p151 = scmp.ne.s32.totalorder %s136, %s150
    %p152 = scmp.eq.s32.totalorder %s21, 0
    %p153 = por %p151, %p152
    %s155 = sadd.s32 %s154, 1
    %p158 = scmp.eq.s32.totalorder %s15, 1
    %p159 = scmp.ne.s32.totalorder %s154, %s156
    %p160 = scmp.eq.s32.totalorder %s15, 0
    %p161 = por %p159, %p160
    %p162 = scmp.ne.s32.totalorder %s154, %s156
    %p163 = scmp.eq.s32.totalorder %s20, 1
    %p164 = por %p162, %p163
    %p165 = scmp.ne.s32.totalorder %s156, %s157
    %p166 = scmp.eq.s32.totalorder %s20, 0
    %p167 = por %p165, %p166
    %p168 = scmp.ne.s32.totalorder %s156, %s157
    %p169 = scmp.eq.s32.totalorder %s21, 1
    %p170 = por %p168, %p169
    %p172 = scmp.ne.s32.totalorder %s157, %s171
    %p173 = scmp.eq.s32.totalorder %s21, 0
    %p174 = por %p172, %p173
    %s176 = sadd.s32 %s175, 1
    %p179 = scmp.eq.s32.totalorder %s15, 1
    %p180 = scmp.ne.s32.totalorder %s175, %s177
    %p181 = scmp.eq.s32.totalorder %s15, 0
    %p182 = por %p180, %p181
    %p183 = scmp.ne.s32.totalorder %s175, %s177
    %p184 = scmp.eq.s32.totalorder %s20, 1
    %p185 = por %p183, %p184
    %p186 = scmp.ne.s32.totalorder %s177, %s178
    %p187 = scmp.eq.s32.totalorder %s20, 0
    %p188 = por %p186, %p187
    %p189 = scmp.ne.s32.totalorder %s177, %s178
    %p190 = scmp.eq.s32.totalorder %s21, 1
    %p191 = por %p189, %p190
    %p193 = scmp.ne.s32.totalorder %s178, %s192
    %p194 = scmp.eq.s32.totalorder %s21, 0
    %p195 = por %p193, %p194
    %s196 = ssub.s32 %s22, %s34
    %s197 = ssub.s32 %s23, %s30
    %s198 = sor.u32 %s196, %s197
    %p199 = scmp.eq.s32.totalorder %s198, 0
    %s201 = sadd.s32 %s200, 1
    %s202 = scalar_select %p199, %s200, %s201
    %p205 = pneg %p199
    %p206 = scmp.eq.s32.totalorder %s15, 1
    %p207 = por %p205, %p206
    %p208 = scmp.ne.s32.totalorder %s200, %s203
    %p209 = scmp.eq.s32.totalorder %s15, 0
    %p210 = por %p208, %p209
    %p211 = scmp.ne.s32.totalorder %s200, %s203
    %p212 = scmp.eq.s32.totalorder %s20, 1
    %p213 = por %p211, %p212
    %p214 = scmp.ne.s32.totalorder %s203, %s204
    %p215 = scmp.eq.s32.totalorder %s20, 0
    %p216 = por %p214, %p215
    %p217 = scmp.ne.s32.totalorder %s203, %s204
    %p218 = scmp.eq.s32.totalorder %s21, 1
    %p219 = por %p217, %p218
    %p221 = scmp.ne.s32.totalorder %s204, %s220
    %p222 = scmp.eq.s32.totalorder %s21, 0
    %p223 = por %p221, %p222
    %p224 = scmp.le.s32.totalorder 1, %s15
    %p225 = scmp.lt.s32.totalorder %s15, 3
    %p226 = pnand %p224, %p225
    %p227 = pneg %p226
    // Predicated region
    $region9: #{_attention_block_impl.1} parent=5 // pred_check
      _
    $region10: #{_attention_block_impl.1} parent=5 // pred_check_branch
      %229 = sbr.rel (%p226) target = $region12
    $region11: #{_attention_block_impl.1} parent=5 // pred_region
      %s230 = ssub.s32 %s15, 1
      // Predicated region
      $region13: #{_attention_block_impl.1} parent=11 // pred_check
        %p231 = pneg %p104
      $region14: #{_attention_block_impl.1} parent=11 // pred_check_branch
        %233 = sbr.rel (%p231) target = $region16
      $region15: #{_attention_block_impl.1} parent=11 // pred_region
        _
      $region16: #{_attention_block_impl.1} parent=11 // pred_fallthru
        _
      // Predicated region
      $region17: #{_attention_block_impl.1} parent=11 // pred_check
        %p234 = pneg %p125
      $region18: #{_attention_block_impl.1} parent=11 // pred_check_branch
        %236 = sbr.rel (%p234) target = $region20
      $region19: #{_attention_block_impl.1} parent=11 // pred_region
        _
      $region20: #{_attention_block_impl.1} parent=11 // pred_fallthru
        _
      // Predicated region
      $region21: #{_attention_block_impl.1} parent=11 // pred_check
        %p237 = pneg %p146
      $region22: #{_attention_block_impl.1} parent=11 // pred_check_branch
        %239 = sbr.rel (%p237) target = $region24
      $region23: #{_attention_block_impl.1} parent=11 // pred_region
        _
      $region24: #{_attention_block_impl.1} parent=11 // pred_fallthru
        _
      // Predicated region
      $region25: #{_attention_block_impl.1} parent=11 // pred_check
        %p240 = pneg %p167
      $region26: #{_attention_block_impl.1} parent=11 // pred_check_branch
        %242 = sbr.rel (%p240) target = $region28
      $region27: #{_attention_block_impl.1} parent=11 // pred_region
        _
      $region28: #{_attention_block_impl.1} parent=11 // pred_fallthru
        _
      // Predicated region
      $region29: #{_attention_block_impl.1} parent=11 // pred_check
        %p243 = pneg %p188
      $region30: #{_attention_block_impl.1} parent=11 // pred_check_branch
        %245 = sbr.rel (%p243) target = $region32
      $region31: #{_attention_block_impl.1} parent=11 // pred_region
        _
      $region32: #{_attention_block_impl.1} parent=11 // pred_fallthru
        _
    $region12: #{_attention_block_impl.1} parent=5 // pred_fallthru
      _
    %p246 = scmp.lt.s32.totalorder %s15, 2
    // Predicated region
    $region33: #{_attention_block_impl.1} parent=5 // pred_check
      %p247 = pneg %p246
    $region34: #{_attention_block_impl.1} parent=5 // pred_check_branch
      %249 = sbr.rel (%p247) target = $region36
    $region35: #{_attention_block_impl.1} parent=5 // pred_region
      // Predicated region
      $region37: #{_attention_block_impl.1} parent=35 // pred_check
        %p250 = pneg %p49
      $region38: #{_attention_block_impl.1} parent=35 // pred_check_branch
        %252 = sbr.rel (%p250) target = $region40
      $region39: #{_attention_block_impl.1} parent=35 // pred_region
        %s253 = smul.u32 2, %s23
        %p254 = scmp.lt.s32.totalorder %s22, 1
        %s255 = scalar_select %p254, %s22, 1
        %p256 = scmp.lt.s32.totalorder %s253, 1
        %s257 = scalar_select %p256, %s253, 1
        %s258 = smul.addr %s255, 2
        %s259 = sadd.s32 %s257, %s258
        %s260 = smul.addr %s259, 4
        %s261 = scalar_lea.vmem %s0, %s260
        %s262 = smul.u32 2, %s23
      $region40: #{_attention_block_impl.1} parent=35 // pred_fallthru
        _
      // Predicated region
      $region41: #{_attention_block_impl.1} parent=35 // pred_check
        %p263 = pneg %p77
      $region42: #{_attention_block_impl.1} parent=35 // pred_check_branch
        %265 = sbr.rel (%p263) target = $region44
      $region43: #{_attention_block_impl.1} parent=35 // pred_region
        %s266 = smul.u32 2, %s23
        %p267 = scmp.lt.s32.totalorder %s22, 1
        %s268 = scalar_select %p267, %s22, 1
        %p269 = scmp.lt.s32.totalorder %s266, 1
        %s270 = scalar_select %p269, %s266, 1
        %s271 = smul.addr %s268, 2
        %s272 = sadd.s32 %s270, %s271
        %s273 = smul.addr %s272, 4
        %s274 = scalar_lea.vmem %s1, %s273
        %s275 = smul.u32 2, %s23
      $region44: #{_attention_block_impl.1} parent=35 // pred_fallthru
        _
    $region36: #{_attention_block_impl.1} parent=5 // pred_fallthru
      _
    %p276 = scmp.le.s32.totalorder 1, %s15
    %p277 = scmp.lt.s32.totalorder %s15, 3
    %p278 = pnand %p276, %p277
    %p279 = pneg %p278
    // Predicated region
    $region45: #{_attention_block_impl.1} parent=5 // pred_check
      _
    $region46: #{_attention_block_impl.1} parent=5 // pred_check_branch
      %281 = sbr.rel (%p278) target = $region48
    $region47: #{_attention_block_impl.1} parent=5 // pred_region
      %s282 = ssub.s32 %s15, 1
      %s283 = smul.u32 2, %s25
      %p284 = scmp.lt.s32.totalorder %s24, 1
      %s285 = scalar_select %p284, %s24, 1
      %p286 = scmp.lt.s32.totalorder %s283, 1
      %s287 = scalar_select %p286, %s283, 1
      %s288 = smul.addr %s285, 2
      %s289 = sadd.s32 %s287, %s288
      %s290 = smul.addr %s289, 4
      %s291 = scalar_lea.vmem %s0, %s290
      %p292 = pneg %p55
      %p293 = pneg %p52
      %s294 = smul.u32 2, %s25
      %p295 = scmp.lt.s32.totalorder %s24, 1
      %s296 = scalar_select %p295, %s24, 1
      %p297 = scmp.lt.s32.totalorder %s294, 1
      %s298 = scalar_select %p297, %s294, 1
      %s299 = smul.addr %s296, 2
      %s300 = sadd.s32 %s298, %s299
      %s301 = smul.addr %s300, 4
      %s302 = scalar_lea.vmem %s1, %s301
      %p303 = pneg %p83
      %p304 = pneg %p80
      %p305 = pneg %p104
      %p306 = pneg %p101
      %p307 = pneg %p125
      %p308 = pneg %p122
      %p309 = pneg %p146
      %p310 = pneg %p143
      %p311 = pneg %p167
      %p312 = pneg %p164
      %p313 = pneg %p188
      %p314 = pneg %p185
      %p315 = pneg %p216
      %p316 = pneg %p213
      %s317 = smul.u32 2, %s25
      %p318 = scmp.lt.s32.totalorder %s24, 1
      %s319 = scalar_select %p318, %s24, 1
      %p320 = scmp.lt.s32.totalorder %s317, 1
      %s321 = scalar_select %p320, %s317, 1
      %s322 = smul.addr %s319, 2
      %s323 = sadd.s32 %s321, %s322
      %s324 = smul.addr %s323, 4
      %s325 = scalar_lea.vmem %s7, %s324
      %s326 = smul.u32 2, %s25
      %p327 = scmp.lt.s32.totalorder %s24, 1
      %s328 = scalar_select %p327, %s24, 1
      %p329 = scmp.lt.s32.totalorder %s326, 1
      %s330 = scalar_select %p329, %s326, 1
      %s331 = smul.addr %s328, 2
      %s332 = sadd.s32 %s330, %s331
      %s333 = smul.addr %s332, 4
      %s334 = scalar_lea.vmem %s0, %s333
      %s335 = smul.u32 2, %s25
      %s336 = smul.u32 2, %s25
      %p337 = scmp.lt.s32.totalorder %s24, 1
      %s338 = scalar_select %p337, %s24, 1
      %p339 = scmp.lt.s32.totalorder %s336, 1
      %s340 = scalar_select %p339, %s336, 1
      %s341 = smul.addr %s338, 2
      %s342 = sadd.s32 %s340, %s341
      %s343 = smul.addr %s342, 4
      %s344 = scalar_lea.vmem %s1, %s343
      %s345 = smul.u32 2, %s25
      %s346 = smul.u32 2, %s25
      %p347 = scmp.lt.s32.totalorder %s24, 1
      %s348 = scalar_select %p347, %s24, 1
      %p349 = scmp.lt.s32.totalorder %s346, 1
      %s350 = scalar_select %p349, %s346, 1
      %s351 = smul.addr %s348, 2
      %s352 = sadd.s32 %s350, %s351
      %s353 = smul.addr %s352, 4
      %s354 = scalar_lea.vmem %s7, %s353
      %s355 = smul.u32 2, %s25
      %v356 = vld [vmem:[%s4] sm:$0xff]
      %v357 = vld [vmem:[%s5] sm:$0xff]
      %v358 = vld [vmem:[#allocation2] sm:$0x1]
      %v359 = vld [vmem:[%s334] sm:$0xff]
      %v360 = vld [vmem:[%s344] sm:$0xff]
      %v361 = vld [vmem:[%s2] sm:$0xff]
      %v362 = vld [vmem:[%s3] sm:$0xff]
      %v364 = vcombine.high %v360, %v360
      %vm365 = vcmask 31744
      %v367 = vsel %vm365, %v362, 0
      %vm369 = vcmask 1043456
      %v370 = vsel %vm369, %v360, 0
      %v372 = vsel %vm369, %v364, 0
      %374 = vmatprep.subr.mxu0 0.0
      %375 = vmatpush1.msra.mxu0 0.0
      %376 = vmatprep.subr.mxu0 0.0
      %377 = vmatpush1.msra.mxu0 0.0
      %378 = vmatprep.subr.mxu0 0.0
      %379 = vmatpush1.msra.mxu0 0.0
      %380 = vmatprep.subr.mxu0 0.0
      %381 = vmatpush1.msra.mxu0 0.0
      %382 = vmatprep.subr.mxu0 0.0
      %383 = vmatpush1.msra.mxu0 0.0
      %384 = vmatprep.subr.mxu0 0.0
      %385 = vmatpush1.msra.mxu0 0.0
      %386 = vmatprep.subr.mxu0 0.0
      %387 = vmatpush1.msra.mxu0 0.0
      %388 = vmatprep.subr.mxu0 0.0
      %389 = vmatpush1.msra.mxu0 0.0
      %390 = vmatprep.subr.mxu0 0.0
      %391 = vmatpush1.msra.mxu0 0.0
      %392 = vmatprep.subr.mxu0 0.0
      %393 = vmatpush1.msra.mxu0 0.0
      %394 = vmatprep.subr.mxu0 0.0
      %395 = vmatpush1.msra.mxu0 0.0
      %396 = vmatprep.subr.mxu0 0.0
      %397 = vmatpush1.msra.mxu0 0.0
      %398 = vmatprep.subr.mxu0 0.0
      %399 = vmatpush1.msra.mxu0 0.0
      %400 = vmatprep.subr.mxu0 0.0
      %401 = vmatpush1.msra.mxu0 0.0
      %402 = vmatprep.subr.mxu0 0.0
      %403 = vmatpush1.msra.mxu0 0.0
      %404 = vmatprep.subr.mxu0 %v372
      %405 = vmatpush1.msra.mxu0 %v370
      %406 = vmatprep.subr.mxu0 0.0
      %407 = vmatpush2.msra.mxu0 0.0
      %408 = vmatprep.subr.mxu0 0.0
      %409 = vmatpush2.msra.mxu0 0.0
      %410 = vmatprep.subr.mxu0 0.0
      %411 = vmatpush2.msra.mxu0 0.0
      %412 = vmatprep.subr.mxu0 0.0
      %413 = vmatpush2.msra.mxu0 0.0
      %414 = vmatprep.subr.mxu0 0.0
      %415 = vmatpush2.msra.mxu0 0.0
      %416 = vmatprep.subr.mxu0 0.0
      %417 = vmatpush2.msra.mxu0 0.0
      %418 = vmatprep.subr.mxu0 0.0
      %419 = vmatpush2.msra.mxu0 0.0
      %420 = vmatprep.subr.mxu0 0.0
      %421 = vmatpush2.msra.mxu0 0.0
      %422 = vmatprep.subr.mxu0 0.0
      %423 = vmatpush2.msra.mxu0 0.0
      %424 = vmatprep.subr.mxu0 0.0
      %425 = vmatpush2.msra.mxu0 0.0
      %426 = vmatprep.subr.mxu0 0.0
      %427 = vmatpush2.msra.mxu0 0.0
      %428 = vmatprep.subr.mxu0 0.0
      %429 = vmatpush2.msra.mxu0 0.0
      %430 = vmatprep.subr.mxu0 0.0
      %431 = vmatpush2.msra.mxu0 0.0
      %432 = vmatprep.subr.mxu0 0.0
      %433 = vmatpush2.msra.mxu0 0.0
      %434 = vmatprep.subr.mxu0 0.0
      %435 = vmatpush2.msra.mxu0 0.0
      %436 = vmatprep.subr.mxu0 0.0
      %437 = vmatpush2.msra.mxu0 0.0
      %438 = vmatprep.mubr.f32.mxu0 0.0
      %439 = vmatmul.mubr.f32.gmra.mxu0 %v367
      %v440 = vpop.f32.mrf.mxu0
      %v441 = vadd.f32 0.0, %v440
      %v442 = vpop.f32.mrf.mxu0
      %v443 = vadd.f32 0.0, %v442
      %444 = vdwg.mxu0
      %v446 = vcombine.high %v359, %v359
      %v448 = vsel %vm365, %v361, 0
      %v450 = vsel %vm369, %v359, 0
      %v452 = vsel %vm369, %v446, 0
      %454 = vmatprep.subr.mxu0 0.0
      %455 = vmatpush1.msra.mxu0 0.0
      %456 = vmatprep.subr.mxu0 0.0
      %457 = vmatpush1.msra.mxu0 0.0
      %458 = vmatprep.subr.mxu0 0.0
      %459 = vmatpush1.msra.mxu0 0.0
      %460 = vmatprep.subr.mxu0 0.0
      %461 = vmatpush1.msra.mxu0 0.0
      %462 = vmatprep.subr.mxu0 0.0
      %463 = vmatpush1.msra.mxu0 0.0
      %464 = vmatprep.subr.mxu0 0.0
      %465 = vmatpush1.msra.mxu0 0.0
      %466 = vmatprep.subr.mxu0 0.0
      %467 = vmatpush1.msra.mxu0 0.0
      %468 = vmatprep.subr.mxu0 0.0
      %469 = vmatpush1.msra.mxu0 0.0
      %470 = vmatprep.subr.mxu0 0.0
      %471 = vmatpush1.msra.mxu0 0.0
      %472 = vmatprep.subr.mxu0 0.0
      %473 = vmatpush1.msra.mxu0 0.0
      %474 = vmatprep.subr.mxu0 0.0
      %475 = vmatpush1.msra.mxu0 0.0
      %476 = vmatprep.subr.mxu0 0.0
      %477 = vmatpush1.msra.mxu0 0.0
      %478 = vmatprep.subr.mxu0 0.0
      %479 = vmatpush1.msra.mxu0 0.0
      %480 = vmatprep.subr.mxu0 0.0
      %481 = vmatpush1.msra.mxu0 0.0
      %482 = vmatprep.subr.mxu0 0.0
      %483 = vmatpush1.msra.mxu0 0.0
      %484 = vmatprep.subr.mxu0 %v452
      %485 = vmatpush1.msra.mxu0 %v450
      %486 = vmatprep.subr.mxu0 0.0
      %487 = vmatpush2.msra.mxu0 0.0
      %488 = vmatprep.subr.mxu0 0.0
      %489 = vmatpush2.msra.mxu0 0.0
      %490 = vmatprep.subr.mxu0 0.0
      %491 = vmatpush2.msra.mxu0 0.0
      %492 = vmatprep.subr.mxu0 0.0
      %493 = vmatpush2.msra.mxu0 0.0
      %494 = vmatprep.subr.mxu0 0.0
      %495 = vmatpush2.msra.mxu0 0.0
      %496 = vmatprep.subr.mxu0 0.0
      %497 = vmatpush2.msra.mxu0 0.0
      %498 = vmatprep.subr.mxu0 0.0
      %499 = vmatpush2.msra.mxu0 0.0
      %500 = vmatprep.subr.mxu0 0.0
      %501 = vmatpush2.msra.mxu0 0.0
      %502 = vmatprep.subr.mxu0 0.0
      %503 = vmatpush2.msra.mxu0 0.0
      %504 = vmatprep.subr.mxu0 0.0
      %505 = vmatpush2.msra.mxu0 0.0
      %506 = vmatprep.subr.mxu0 0.0
      %507 = vmatpush2.msra.mxu0 0.0
      %508 = vmatprep.subr.mxu0 0.0
      %509 = vmatpush2.msra.mxu0 0.0
      %510 = vmatprep.subr.mxu0 0.0
      %511 = vmatpush2.msra.mxu0 0.0
      %512 = vmatprep.subr.mxu0 0.0
      %513 = vmatpush2.msra.mxu0 0.0
      %514 = vmatprep.subr.mxu0 0.0
      %515 = vmatpush2.msra.mxu0 0.0
      %516 = vmatprep.subr.mxu0 0.0
      %517 = vmatpush2.msra.mxu0 0.0
      %518 = vmatprep.mubr.f32.mxu0 0.0
      %519 = vmatmul.mubr.f32.gmra.mxu0 %v448
      %v520 = vpop.f32.mrf.mxu0
      %v521 = vadd.f32 %v441, %v520
      %v522 = vpop.f32.mrf.mxu0
      %v523 = vadd.f32 %v443, %v522
      %524 = vdwg.mxu0
      %526 = vset.pattern.permute.xlu0 0
      %527 = vperm.xlu0 %526, %v356
      %v528 = vpop.permute.xlu0 %527
      %v530 = vadd.f32 %v521, %v528
      %v531 = vadd.f32 %v523, %v528
      %v532 = vmax.f32 %v530, 0.0
      %v533 = vmax.f32 %v531, 0.0
      %535 = vset.pattern.permute.xlu0 0
      %536 = vperm.xlu0 %535, %v357
      %v537 = vpop.permute.xlu0 %536
      %v539 = vmul.f32 %v532, %v537
      %v540 = vmul.f32 %v533, %v537
      %v541 = vrot.slane %v539, 4
      %v542 = vadd.f32 %v539, %v541
      %v543 = vrot.slane %v542, 2
      %v544 = vadd.f32 %v542, %v543
      %v545 = vrot.slane %v544, 1
      %v546 = vadd.f32 %v544, %v545
      %v547 = vrot.slane %v540, 4
      %v548 = vadd.f32 %v540, %v547
      %v549 = vrot.slane %v548, 2
      %v550 = vadd.f32 %v548, %v549
      %v551 = vrot.slane %v550, 1
      %v552 = vadd.f32 %v550, %v551
      %554 = vset.pattern.permute.xlu0 0
      %555 = vperm.xlu0 %554, %v358
      %v556 = vpop.permute.xlu0 %555
      %v558 = vlaneseq
      %v559 = vshrl.u32 %v558, 7
      %v560 = vsub.s32 0, %v559
      %v561 = vrot.slane %v556, %v560
      %v562 = vadd.f32 %v546, %v561
      %v563 = vadd.f32 %v552, %v561
      %v564 = vxor.u32 %v562, 2147483648
      %v565 = vxor.u32 %v563, 2147483648
      %v566 = vmul.f32 %v564, 1.442695
      %v567 = vpow.pop %v566
      %v568 = vmul.f32 %v565, 1.442695
      %v569 = vpow.pop %v568
      %v570 = vadd.f32 %v567, 1.0
      %v571 = vadd.f32 %v569, 1.0
      %v572 = vrcp.pop %v570
      %v573 = vmul.f32 1.0, %v572
      %v574 = vrcp.pop %v571
      %v575 = vmul.f32 1.0, %v574
      %v578 = vcombine.low %v573, %v575
      %v580 = vmul.f32 %v360, %v578
      %581 = vst [vmem:[%s354] sm:$0xff] %v580
      %s582 = smul.u32 2, %s25
      %p583 = scmp.lt.s32.totalorder %s24, 1
      %s584 = scalar_select %p583, %s24, 1
      %p585 = scmp.lt.s32.totalorder %s582, 1
      %s586 = scalar_select %p585, %s582, 1
      %s587 = smul.addr %s584, 2
      %s588 = sadd.s32 %s586, %s587
      %s589 = smul.addr %s588, 4
      %s590 = scalar_lea.vmem %s7, %s589
      // Predicated region
      $region49: #{_attention_block_impl.1} parent=47 // pred_check
        %p591 = pneg %p213
      $region50: #{_attention_block_impl.1} parent=47 // pred_check_branch
        %593 = sbr.rel (%p591) target = $region52
      $region51: #{_attention_block_impl.1} parent=47 // pred_region
        %s594 = smul.u32 2, %s25
      $region52: #{_attention_block_impl.1} parent=47 // pred_fallthru
        _
    $region48: #{_attention_block_impl.1} parent=5 // pred_fallthru
      _
    %p595 = scmp.le.s32.totalorder 2, %s15
    // Predicated region
    $region53: #{_attention_block_impl.1} parent=5 // pred_check
      %p596 = pneg %p595
    $region54: #{_attention_block_impl.1} parent=5 // pred_check_branch
      %598 = sbr.rel (%p596) target = $region56
    $region55: #{_attention_block_impl.1} parent=5 // pred_region
      %s599 = ssub.s32 %s15, 2
      // Predicated region
      $region57: #{_attention_block_impl.1} parent=55 // pred_check
        %p600 = pneg %p219
      $region58: #{_attention_block_impl.1} parent=55 // pred_check_branch
        %602 = sbr.rel (%p600) target = $region60
      $region59: #{_attention_block_impl.1} parent=55 // pred_region
        %s603 = smul.u32 2, %s27
        %p604 = scmp.lt.s32.totalorder %s26, 1
        %s605 = scalar_select %p604, %s26, 1
        %p606 = scmp.lt.s32.totalorder %s603, 1
        %s607 = scalar_select %p606, %s603, 1
        %s608 = smul.addr %s605, 2
        %s609 = sadd.s32 %s607, %s608
        %s610 = smul.addr %s609, 4
        %s611 = scalar_lea.vmem %s7, %s610
      $region60: #{_attention_block_impl.1} parent=55 // pred_fallthru
        _
    $region56: #{_attention_block_impl.1} parent=5 // pred_fallthru
      _
  $region6: #{_attention_block_impl.1} parent=0 // loop_footer
    %s19 = sadd.s32 1, %s15
  $region7: #{_attention_block_impl.1} parent=0 // loop_footer_branch
    %14 = sbr.rel target = $region3
  $region8: #{_attention_block_impl.1} parent=0 // loop_exit
    _

</llo_original>
